<compile_context>
chip_gen: v5e
topology: v5e:2x2
jax: 0.10.0
libtpu: 0.0.40
codegen_flags: <defaults>
</compile_context>

<pallas_src>
import functools

import jax
import jax.numpy as jnp
from jax import lax
from jax.experimental import pallas as pl
from jax.experimental.pallas import tpu as pltpu

# ---- small, self-consistent demo sizes (scaled down from 1536/6144/10) ------
NUM_EXPERTS = 10
MODEL_DIM = 128
HIDDEN = 256
TOKENS = 16

WEIGHT_DTYPE = jnp.bfloat16          # streamed weight dtype (f32 accumulation)

# Truly-fused (no grid, everything resident) path only for tiny toy weights.
_FUSED_WEIGHT_BUDGET = 2 * 1024 * 1024


# ----------------------------------------------------------------------------
# Hardware-aware knobs.
# ----------------------------------------------------------------------------
def _tpu_vmem_capacity_bytes():
    try:
        return int(pltpu.get_tpu_info().vmem_capacity_bytes)
    except Exception:
        return 64 * 1024 * 1024       # conservative fallback (v7x per-core VMEM)


def _vmem_limit_bytes(cap):
    # ~54 MiB on v7x (64 MiB physical), 96 MiB on v5e/v6e (128 MiB physical).
    return min(int(cap * 0.85), 96 * 1024 * 1024)


def _is_v5():
    try:
        return "v5" in jax.devices()[0].device_kind.lower()
    except Exception:
        return False


def _pick_token_tile(T, preferred):
    if T <= preferred:
        return T
    for tt in (preferred, 256, 128, 64, 32, 16, 8):
        if tt <= T and T % tt == 0:
            return tt
    return T   # irregular T: single tile


def _pick_hidden_chunk(D, H, T, cap, budget, w_itemsize, act_itemsize):
    """Largest hidden chunk whose working set fits the VMEM budget."""
    # On v7x-class VMEM (<~100 MiB) do not scale tk past 2048.
    max_tk = H if cap >= 100 * (1 << 20) else min(H, 2048)
    cands = sorted(
        {c for c in (H, 4096, 3072, 2048, 1536, 1024, 768, 512, 384, 256, 128)
         if c <= max_tk and H % c == 0 and (c % 128 == 0 or c == H)},
        reverse=True)
    if not cands:
        return H
    margin = 2 * (1 << 20)
    act_bytes = (2 * T * D * act_itemsize        # resident x input block
                 + 2 * T * D * act_itemsize      # resident output block
                 + T * D * (2 + 4))              # bf16 x_scr + f32 acc_scr
    for tk in cands:
        w_bytes = 2 * (2 * D * tk) * w_itemsize          # w1+w2, double-buffered
        b_bytes = 2 * (tk + D) * w_itemsize * 2          # biases, double-buffered
        if w_bytes + b_bytes + act_bytes + margin <= budget:
            return tk
    return cands[-1]


# ----------------------------------------------------------------------------
# Path 1: fused kernel — all weights resident in VMEM, no grid (toy sizes only).
# ----------------------------------------------------------------------------
def _fused_experts_kernel(x_ref, w1_ref, b1_ref, w2_ref, b2_ref, o_ref):
    num_experts = w1_ref.shape[0]          # static
    compute_dtype = w1_ref.dtype           # bf16

    def one_expert(e, y):
        h = jnp.dot(y.astype(compute_dtype), w1_ref[e],
                    preferred_element_type=jnp.float32)
        h = jnp.maximum(h + b1_ref[e].astype(jnp.float32), 0.0)
        y = jnp.dot(h.astype(compute_dtype), w2_ref[e],
                    preferred_element_type=jnp.float32)
        return y + b2_ref[e].astype(jnp.float32)

    y = lax.fori_loop(0, num_experts, one_expert,
                      x_ref[...].astype(jnp.float32), unroll=True)
    o_ref[...] = y.astype(o_ref.dtype)


def _forward_fused(x, w1, b1, w2, b2, vmem_limit):
    T, D = x.shape
    vmem = pl.BlockSpec(memory_space=pltpu.MemorySpace.VMEM)
    return pl.pallas_call(
        _fused_experts_kernel,
        out_shape=jax.ShapeDtypeStruct((T, D), x.dtype),
        in_specs=[vmem, vmem, vmem, vmem, vmem],
        out_specs=vmem,
        compiler_params=pltpu.CompilerParams(vmem_limit_bytes=vmem_limit),
    )(x, w1, b1, w2, b2)


# ----------------------------------------------------------------------------
# Path 2: streamed kernel — grid = (num_experts, H // tk, T // tt).
#   * running activation lives in a bf16 VMEM scratch across the whole grid
#   * per-expert fc2 output accumulated in an f32 VMEM scratch over hidden
#     chunks, committed (+ b2) on the last hidden chunk
#   * token tile is innermost; weight index_maps ignore it, so each (e, k)
#     weight tile is DMA'd exactly once and reused for all token tiles.
# ----------------------------------------------------------------------------
def _chunked_experts_kernel(x_ref, w1_ref, b1_ref, w2_ref, b2_ref, o_ref,
                            x_scr, acc_scr, *, token_tile):
    e = pl.program_id(0)
    k = pl.program_id(1)
    t = pl.program_id(2)
    last_e = pl.num_programs(0) - 1
    last_k = pl.num_programs(1) - 1

    tt = token_tile
    rows = pl.ds(pl.multiple_of(t * tt, tt), tt)

    @pl.when((e == 0) & (k == 0))
    def _():
        # Seed the running activation (bf16, the MXU input dtype).
        x_scr[rows, :] = x_ref[rows, :].astype(x_scr.dtype)

    @pl.when(k == 0)
    def _():
        acc_scr[rows, :] = jnp.zeros((tt, acc_scr.shape[1]), acc_scr.dtype)

    xb = x_scr[rows, :]                                              # (tt, D) bf16
    # fc1 chunk + ReLU: hidden columns [k*tk, (k+1)*tk).
    h = jnp.dot(xb, w1_ref[...], preferred_element_type=jnp.float32)  # (tt, tk)
    h = jnp.maximum(h + b1_ref[...].astype(jnp.float32), 0.0)
    # fc2 partial: contract this hidden chunk, accumulate in f32.
    acc_scr[rows, :] += jnp.dot(h.astype(xb.dtype), w2_ref[...],
                                preferred_element_type=jnp.float32)

    @pl.when(k == last_k)
    def _():
        y = acc_scr[rows, :] + b2_ref[...].astype(jnp.float32)        # (tt, D) f32
        x_scr[rows, :] = y.astype(x_scr.dtype)                        # feed next expert

        @pl.when(e == last_e)
        def _():
            o_ref[rows, :] = y.astype(o_ref.dtype)


def _forward_chunked(x, w1, b1, w2, b2, *, hidden_chunk=None, token_tile=None):
    T, D = x.shape
    E, _, H = w1.shape

    cap = _tpu_vmem_capacity_bytes()
    vmem_limit = _vmem_limit_bytes(cap)

    tt = token_tile if token_tile is not None else _pick_token_tile(
        T, 128 if _is_v5() else 256)
    assert T % tt == 0, (T, tt)
    nt = T // tt

    if hidden_chunk is not None:
        tk = hidden_chunk
    else:
        tk = _pick_hidden_chunk(D, H, T, cap, vmem_limit,
                                jnp.dtype(w1.dtype).itemsize,
                                jnp.dtype(x.dtype).itemsize)
    assert H % tk == 0 and (tk % 128 == 0 or tk == H), (H, tk)
    nk = H // tk

    # 2-D bias blocks (lane-major), expert dim squeezed away by the BlockSpec.
    b1_2d = b1.reshape(E, 1, H)
    b2_2d = b2.reshape(E, 1, D)

    kernel = functools.partial(_chunked_experts_kernel, token_tile=tt)

    return pl.pallas_call(
        kernel,
        out_shape=jax.ShapeDtypeStruct((T, D), x.dtype),
        grid_spec=pltpu.PrefetchScalarGridSpec(
            num_scalar_prefetch=0,
            grid=(E, nk, nt),
            in_specs=[
                # x: constant block -> DMA'd once, resident.
                pl.BlockSpec((T, D), lambda e, k, t: (0, 0)),
                # w1[e][:, k*tk:(k+1)*tk]   (token index ignored)
                pl.BlockSpec((pl.Squeezed(), D, tk), lambda e, k, t: (e, 0, k)),
                # b1[e][:, k*tk:(k+1)*tk]  -> kernel sees (1, tk)
                pl.BlockSpec((pl.Squeezed(), 1, tk), lambda e, k, t: (e, 0, k)),
                # w2[e][k*tk:(k+1)*tk, :]
                pl.BlockSpec((pl.Squeezed(), tk, D), lambda e, k, t: (e, k, 0)),
                # b2[e] -> kernel sees (1, D)
                pl.BlockSpec((pl.Squeezed(), 1, D), lambda e, k, t: (e, 0, 0)),
            ],
            out_specs=pl.BlockSpec((T, D), lambda e, k, t: (0, 0)),
            scratch_shapes=[
                pltpu.VMEM((T, D), jnp.bfloat16),   # running activation (bf16)
                pltpu.VMEM((T, D), jnp.float32),    # per-expert f32 accumulator
            ],
        ),
        compiler_params=pltpu.CompilerParams(
            # State is carried through scratch across all axes -> sequential.
            # (Weight-BW bound at small T: do not engage the 2nd TensorCore.)
            dimension_semantics=("arbitrary", "arbitrary", "arbitrary"),
            vmem_limit_bytes=vmem_limit),
    )(x, w1, b1_2d, w2, b2_2d)


def baseline_model_forward(x, w1, b1, w2, b2, *, hidden_chunk=None,
                           token_tile=None, force_chunked=False):
    """x: [T, D]; w1: [E, D, H]; b1: [E, H]; w2: [E, H, D]; b2: [E, D]."""
    weight_bytes = ((w1.size + b1.size + w2.size + b2.size)
                    * jnp.dtype(w1.dtype).itemsize)
    if not force_chunked and weight_bytes <= _FUSED_WEIGHT_BUDGET:
        return _forward_fused(x, w1, b1, w2, b2,
                              _vmem_limit_bytes(_tpu_vmem_capacity_bytes()))
    return _forward_chunked(x, w1, b1, w2, b2,
                            hidden_chunk=hidden_chunk, token_tile=token_tile)


# ----------------------------------------------------------------------------
# Parameter init + pure-JAX reference.
# ----------------------------------------------------------------------------
def _init_params(key, dtype=WEIGHT_DTYPE):
    """Mirrors torch.nn.Linear's U(-1/sqrt(fan_in), 1/sqrt(fan_in)) init.
    Weights stored as [in, out] (transposed vs. PyTorch's [out, in])."""
    ks = jax.random.split(key, 4)
    bound1 = MODEL_DIM ** -0.5
    bound2 = HIDDEN ** -0.5
    w1 = jax.random.uniform(ks[0], (NUM_EXPERTS, MODEL_DIM, HIDDEN),
                            jnp.float32, -bound1, bound1).astype(dtype)
    b1 = jax.random.uniform(ks[1], (NUM_EXPERTS, HIDDEN),
                            jnp.float32, -bound1, bound1).astype(dtype)
    w2 = jax.random.uniform(ks[2], (NUM_EXPERTS, HIDDEN, MODEL_DIM),
                            jnp.float32, -bound2, bound2).astype(dtype)
    b2 = jax.random.uniform(ks[3], (NUM_EXPERTS, MODEL_DIM),
                            jnp.float32, -bound2, bound2).astype(dtype)
    return w1, b1, w2, b2


def _reference(x, w1, b1, w2, b2):
    """Pure-JAX reference mirroring the kernel math (bf16 weights, f32 accum)."""
    y = x.astype(jnp.float32)
    for e in range(w1.shape[0]):
        h = jnp.dot(y.astype(w1.dtype), w1[e],
                    preferred_element_type=jnp.float32)
        h = jnp.maximum(h + b1[e].astype(jnp.float32), 0.0)
        y = jnp.dot(h.astype(w2.dtype), w2[e],
                    preferred_element_type=jnp.float32)
        y = y + b2[e].astype(jnp.float32)
    return y.astype(x.dtype)


if __name__ == "__main__":
    key = jax.random.PRNGKey(0)
    k_x, k_p = jax.random.split(key)
    x = jax.random.normal(k_x, (TOKENS, MODEL_DIM), jnp.float32)
    w1, b1, w2, b2 = _init_params(k_p)

    ref = _reference(x, w1, b1, w2, b2)

    # 1) Default path at toy sizes (fused, no grid).
    out_fused = jax.block_until_ready(baseline_model_forward(x, w1, b1, w2, b2))
    # 2) Streamed path with auto tiling (tk = H, single token tile).
    out_auto = jax.block_until_ready(
        baseline_model_forward(x, w1, b1, w2, b2, force_chunked=True))
    # 3) Streamed path exercising hidden-chunk accumulation AND token tiling.
    out_chunk = jax.block_until_ready(
        baseline_model_forward(x, w1, b1, w2, b2, force_chunked=True,
                               hidden_chunk=128, token_tile=8))

    for name, out in (("fused", out_fused), ("auto", out_auto),
                      ("chunked", out_chunk)):
        assert out.shape == (TOKENS, MODEL_DIM)
        assert jnp.allclose(out, ref, rtol=2e-2, atol=2e-2), \
            f"{name} kernel mismatch vs. JAX reference"

    print("KERNEL_OK")
</pallas_src>

<mosaic_0001>
module attributes {stable_mosaic.version = 11 : i64} {
  func.func @_fused_experts_kernel(%arg0: memref<16x128xf32, #tpu.memory_space<vmem>>, %arg1: memref<10x128x256xbf16, #tpu.memory_space<vmem>>, %arg2: memref<10x256xbf16, #tpu.memory_space<vmem>>, %arg3: memref<10x256x128xbf16, #tpu.memory_space<vmem>>, %arg4: memref<10x128xbf16, #tpu.memory_space<vmem>>, %arg5: memref<16x128xf32, #tpu.memory_space<vmem>>) attributes {dimension_semantics = [], scalar_prefetch = 0 : i64, scratch_operands = 0 : i64, tpu.core_type = #tpu.core_type<tc>} {
    %c0 = arith.constant 0 : index
    %c0_0 = arith.constant 0 : index
    %0 = vector.load %arg0[%c0, %c0_0] : memref<16x128xf32, #tpu.memory_space<vmem>>, vector<16x128xf32>
    %c0_i32 = arith.constant 0 : i32
    %1 = arith.truncf %0 : vector<16x128xf32> to vector<16x128xbf16>
    %2 = arith.index_cast %c0_i32 : i32 to index
    %c0_1 = arith.constant 0 : index
    %c0_2 = arith.constant 0 : index
    %3 = vector.load %arg1[%2, %c0_1, %c0_2] : memref<10x128x256xbf16, #tpu.memory_space<vmem>>, vector<1x128x256xbf16>
    %4 = vector.shape_cast %3 : vector<1x128x256xbf16> to vector<128x256xbf16>
    %cst = arith.constant dense<0.000000e+00> : vector<16x256xf32>
    %5 = tpu.matmul %1, %4, %cst {dimension_numbers = #tpu.dot_dimension_numbers<[1], [0], [0], [1], [0, 0, 1, 1], [], []>} : vector<16x128xbf16>, vector<128x256xbf16>, vector<16x256xf32> -> vector<16x256xf32>
    %6 = arith.index_cast %c0_i32 : i32 to index
    %c0_3 = arith.constant 0 : index
    %7 = vector.load %arg2[%6, %c0_3] : memref<10x256xbf16, #tpu.memory_space<vmem>>, vector<1x256xbf16>
    %8 = vector.shape_cast %7 : vector<1x256xbf16> to vector<256xbf16>
    %9 = arith.extf %8 : vector<256xbf16> to vector<256xf32>
    %10 = vector.shape_cast %9 : vector<256xf32> to vector<1x256xf32>
    %11 = vector.broadcast %10 : vector<1x256xf32> to vector<16x256xf32>
    %12 = arith.addf %5, %11 : vector<16x256xf32>
    %cst_4 = arith.constant 0.000000e+00 : f32
    %13 = vector.broadcast %cst_4 : f32 to vector<16x256xf32>
    %14 = arith.maximumf %12, %13 : vector<16x256xf32>
    %15 = arith.truncf %14 : vector<16x256xf32> to vector<16x256xbf16>
    %16 = arith.index_cast %c0_i32 : i32 to index
    %c0_5 = arith.constant 0 : index
    %c0_6 = arith.constant 0 : index
    %17 = vector.load %arg3[%16, %c0_5, %c0_6] : memref<10x256x128xbf16, #tpu.memory_space<vmem>>, vector<1x256x128xbf16>
    %18 = vector.shape_cast %17 : vector<1x256x128xbf16> to vector<256x128xbf16>
    %cst_7 = arith.constant dense<0.000000e+00> : vector<16x128xf32>
    %19 = tpu.matmul %15, %18, %cst_7 {dimension_numbers = #tpu.dot_dimension_numbers<[1], [0], [0], [1], [0, 0, 1, 1], [], []>} : vector<16x256xbf16>, vector<256x128xbf16>, vector<16x128xf32> -> vector<16x128xf32>
    %20 = arith.index_cast %c0_i32 : i32 to index
    %c0_8 = arith.constant 0 : index
    %21 = vector.load %arg4[%20, %c0_8] : memref<10x128xbf16, #tpu.memory_space<vmem>>, vector<1x128xbf16>
    %22 = vector.shape_cast %21 : vector<1x128xbf16> to vector<128xbf16>
    %23 = arith.extf %22 : vector<128xbf16> to vector<128xf32>
    %24 = vector.shape_cast %23 : vector<128xf32> to vector<1x128xf32>
    %25 = vector.broadcast %24 : vector<1x128xf32> to vector<16x128xf32>
    %26 = arith.addf %19, %25 : vector<16x128xf32>
    %c1_i32 = arith.constant 1 : i32
    %27 = arith.truncf %26 : vector<16x128xf32> to vector<16x128xbf16>
    %28 = arith.index_cast %c1_i32 : i32 to index
    %c0_9 = arith.constant 0 : index
    %c0_10 = arith.constant 0 : index
    %29 = vector.load %arg1[%28, %c0_9, %c0_10] : memref<10x128x256xbf16, #tpu.memory_space<vmem>>, vector<1x128x256xbf16>
    %30 = vector.shape_cast %29 : vector<1x128x256xbf16> to vector<128x256xbf16>
    %cst_11 = arith.constant dense<0.000000e+00> : vector<16x256xf32>
    %31 = tpu.matmul %27, %30, %cst_11 {dimension_numbers = #tpu.dot_dimension_numbers<[1], [0], [0], [1], [0, 0, 1, 1], [], []>} : vector<16x128xbf16>, vector<128x256xbf16>, vector<16x256xf32> -> vector<16x256xf32>
    %32 = arith.index_cast %c1_i32 : i32 to index
    %c0_12 = arith.constant 0 : index
    %33 = vector.load %arg2[%32, %c0_12] : memref<10x256xbf16, #tpu.memory_space<vmem>>, vector<1x256xbf16>
    %34 = vector.shape_cast %33 : vector<1x256xbf16> to vector<256xbf16>
    %35 = arith.extf %34 : vector<256xbf16> to vector<256xf32>
    %36 = vector.shape_cast %35 : vector<256xf32> to vector<1x256xf32>
    %37 = vector.broadcast %36 : vector<1x256xf32> to vector<16x256xf32>
    %38 = arith.addf %31, %37 : vector<16x256xf32>
    %cst_13 = arith.constant 0.000000e+00 : f32
    %39 = vector.broadcast %cst_13 : f32 to vector<16x256xf32>
    %40 = arith.maximumf %38, %39 : vector<16x256xf32>
    %41 = arith.truncf %40 : vector<16x256xf32> to vector<16x256xbf16>
    %42 = arith.index_cast %c1_i32 : i32 to index
    %c0_14 = arith.constant 0 : index
    %c0_15 = arith.constant 0 : index
    %43 = vector.load %arg3[%42, %c0_14, %c0_15] : memref<10x256x128xbf16, #tpu.memory_space<vmem>>, vector<1x256x128xbf16>
    %44 = vector.shape_cast %43 : vector<1x256x128xbf16> to vector<256x128xbf16>
    %cst_16 = arith.constant dense<0.000000e+00> : vector<16x128xf32>
    %45 = tpu.matmul %41, %44, %cst_16 {dimension_numbers = #tpu.dot_dimension_numbers<[1], [0], [0], [1], [0, 0, 1, 1], [], []>} : vector<16x256xbf16>, vector<256x128xbf16>, vector<16x128xf32> -> vector<16x128xf32>
    %46 = arith.index_cast %c1_i32 : i32 to index
    %c0_17 = arith.constant 0 : index
    %47 = vector.load %arg4[%46, %c0_17] : memref<10x128xbf16, #tpu.memory_space<vmem>>, vector<1x128xbf16>
    %48 = vector.shape_cast %47 : vector<1x128xbf16> to vector<128xbf16>
    %49 = arith.extf %48 : vector<128xbf16> to vector<128xf32>
    %50 = vector.shape_cast %49 : vector<128xf32> to vector<1x128xf32>
    %51 = vector.broadcast %50 : vector<1x128xf32> to vector<16x128xf32>
    %52 = arith.addf %45, %51 : vector<16x128xf32>
    %c2_i32 = arith.constant 2 : i32
    %53 = arith.truncf %52 : vector<16x128xf32> to vector<16x128xbf16>
    %54 = arith.index_cast %c2_i32 : i32 to index
    %c0_18 = arith.constant 0 : index
    %c0_19 = arith.constant 0 : index
    %55 = vector.load %arg1[%54, %c0_18, %c0_19] : memref<10x128x256xbf16, #tpu.memory_space<vmem>>, vector<1x128x256xbf16>
    %56 = vector.shape_cast %55 : vector<1x128x256xbf16> to vector<128x256xbf16>
    %cst_20 = arith.constant dense<0.000000e+00> : vector<16x256xf32>
    %57 = tpu.matmul %53, %56, %cst_20 {dimension_numbers = #tpu.dot_dimension_numbers<[1], [0], [0], [1], [0, 0, 1, 1], [], []>} : vector<16x128xbf16>, vector<128x256xbf16>, vector<16x256xf32> -> vector<16x256xf32>
    %58 = arith.index_cast %c2_i32 : i32 to index
    %c0_21 = arith.constant 0 : index
    %59 = vector.load %arg2[%58, %c0_21] : memref<10x256xbf16, #tpu.memory_space<vmem>>, vector<1x256xbf16>
    %60 = vector.shape_cast %59 : vector<1x256xbf16> to vector<256xbf16>
    %61 = arith.extf %60 : vector<256xbf16> to vector<256xf32>
    %62 = vector.shape_cast %61 : vector<256xf32> to vector<1x256xf32>
    %63 = vector.broadcast %62 : vector<1x256xf32> to vector<16x256xf32>
    %64 = arith.addf %57, %63 : vector<16x256xf32>
    %cst_22 = arith.constant 0.000000e+00 : f32
    %65 = vector.broadcast %cst_22 : f32 to vector<16x256xf32>
    %66 = arith.maximumf %64, %65 : vector<16x256xf32>
    %67 = arith.truncf %66 : vector<16x256xf32> to vector<16x256xbf16>
    %68 = arith.index_cast %c2_i32 : i32 to index
    %c0_23 = arith.constant 0 : index
    %c0_24 = arith.constant 0 : index
    %69 = vector.load %arg3[%68, %c0_23, %c0_24] : memref<10x256x128xbf16, #tpu.memory_space<vmem>>, vector<1x256x128xbf16>
    %70 = vector.shape_cast %69 : vector<1x256x128xbf16> to vector<256x128xbf16>
    %cst_25 = arith.constant dense<0.000000e+00> : vector<16x128xf32>
    %71 = tpu.matmul %67, %70, %cst_25 {dimension_numbers = #tpu.dot_dimension_numbers<[1], [0], [0], [1], [0, 0, 1, 1], [], []>} : vector<16x256xbf16>, vector<256x128xbf16>, vector<16x128xf32> -> vector<16x128xf32>
    %72 = arith.index_cast %c2_i32 : i32 to index
    %c0_26 = arith.constant 0 : index
    %73 = vector.load %arg4[%72, %c0_26] : memref<10x128xbf16, #tpu.memory_space<vmem>>, vector<1x128xbf16>
    %74 = vector.shape_cast %73 : vector<1x128xbf16> to vector<128xbf16>
    %75 = arith.extf %74 : vector<128xbf16> to vector<128xf32>
    %76 = vector.shape_cast %75 : vector<128xf32> to vector<1x128xf32>
    %77 = vector.broadcast %76 : vector<1x128xf32> to vector<16x128xf32>
    %78 = arith.addf %71, %77 : vector<16x128xf32>
    %c3_i32 = arith.constant 3 : i32
    %79 = arith.truncf %78 : vector<16x128xf32> to vector<16x128xbf16>
    %80 = arith.index_cast %c3_i32 : i32 to index
    %c0_27 = arith.constant 0 : index
    %c0_28 = arith.constant 0 : index
    %81 = vector.load %arg1[%80, %c0_27, %c0_28] : memref<10x128x256xbf16, #tpu.memory_space<vmem>>, vector<1x128x256xbf16>
    %82 = vector.shape_cast %81 : vector<1x128x256xbf16> to vector<128x256xbf16>
    %cst_29 = arith.constant dense<0.000000e+00> : vector<16x256xf32>
    %83 = tpu.matmul %79, %82, %cst_29 {dimension_numbers = #tpu.dot_dimension_numbers<[1], [0], [0], [1], [0, 0, 1, 1], [], []>} : vector<16x128xbf16>, vector<128x256xbf16>, vector<16x256xf32> -> vector<16x256xf32>
    %84 = arith.index_cast %c3_i32 : i32 to index
    %c0_30 = arith.constant 0 : index
    %85 = vector.load %arg2[%84, %c0_30] : memref<10x256xbf16, #tpu.memory_space<vmem>>, vector<1x256xbf16>
    %86 = vector.shape_cast %85 : vector<1x256xbf16> to vector<256xbf16>
    %87 = arith.extf %86 : vector<256xbf16> to vector<256xf32>
    %88 = vector.shape_cast %87 : vector<256xf32> to vector<1x256xf32>
    %89 = vector.broadcast %88 : vector<1x256xf32> to vector<16x256xf32>
    %90 = arith.addf %83, %89 : vector<16x256xf32>
    %cst_31 = arith.constant 0.000000e+00 : f32
    %91 = vector.broadcast %cst_31 : f32 to vector<16x256xf32>
    %92 = arith.maximumf %90, %91 : vector<16x256xf32>
    %93 = arith.truncf %92 : vector<16x256xf32> to vector<16x256xbf16>
    %94 = arith.index_cast %c3_i32 : i32 to index
    %c0_32 = arith.constant 0 : index
    %c0_33 = arith.constant 0 : index
    %95 = vector.load %arg3[%94, %c0_32, %c0_33] : memref<10x256x128xbf16, #tpu.memory_space<vmem>>, vector<1x256x128xbf16>
    %96 = vector.shape_cast %95 : vector<1x256x128xbf16> to vector<256x128xbf16>
    %cst_34 = arith.constant dense<0.000000e+00> : vector<16x128xf32>
    %97 = tpu.matmul %93, %96, %cst_34 {dimension_numbers = #tpu.dot_dimension_numbers<[1], [0], [0], [1], [0, 0, 1, 1], [], []>} : vector<16x256xbf16>, vector<256x128xbf16>, vector<16x128xf32> -> vector<16x128xf32>
    %98 = arith.index_cast %c3_i32 : i32 to index
    %c0_35 = arith.constant 0 : index
    %99 = vector.load %arg4[%98, %c0_35] : memref<10x128xbf16, #tpu.memory_space<vmem>>, vector<1x128xbf16>
    %100 = vector.shape_cast %99 : vector<1x128xbf16> to vector<128xbf16>
    %101 = arith.extf %100 : vector<128xbf16> to vector<128xf32>
    %102 = vector.shape_cast %101 : vector<128xf32> to vector<1x128xf32>
    %103 = vector.broadcast %102 : vector<1x128xf32> to vector<16x128xf32>
    %104 = arith.addf %97, %103 : vector<16x128xf32>
    %c4_i32 = arith.constant 4 : i32
    %105 = arith.truncf %104 : vector<16x128xf32> to vector<16x128xbf16>
    %106 = arith.index_cast %c4_i32 : i32 to index
    %c0_36 = arith.constant 0 : index
    %c0_37 = arith.constant 0 : index
    %107 = vector.load %arg1[%106, %c0_36, %c0_37] : memref<10x128x256xbf16, #tpu.memory_space<vmem>>, vector<1x128x256xbf16>
    %108 = vector.shape_cast %107 : vector<1x128x256xbf16> to vector<128x256xbf16>
    %cst_38 = arith.constant dense<0.000000e+00> : vector<16x256xf32>
    %109 = tpu.matmul %105, %108, %cst_38 {dimension_numbers = #tpu.dot_dimension_numbers<[1], [0], [0], [1], [0, 0, 1, 1], [], []>} : vector<16x128xbf16>, vector<128x256xbf16>, vector<16x256xf32> -> vector<16x256xf32>
    %110 = arith.index_cast %c4_i32 : i32 to index
    %c0_39 = arith.constant 0 : index
    %111 = vector.load %arg2[%110, %c0_39] : memref<10x256xbf16, #tpu.memory_space<vmem>>, vector<1x256xbf16>
    %112 = vector.shape_cast %111 : vector<1x256xbf16> to vector<256xbf16>
    %113 = arith.extf %112 : vector<256xbf16> to vector<256xf32>
    %114 = vector.shape_cast %113 : vector<256xf32> to vector<1x256xf32>
    %115 = vector.broadcast %114 : vector<1x256xf32> to vector<16x256xf32>
    %116 = arith.addf %109, %115 : vector<16x256xf32>
    %cst_40 = arith.constant 0.000000e+00 : f32
    %117 = vector.broadcast %cst_40 : f32 to vector<16x256xf32>
    %118 = arith.maximumf %116, %117 : vector<16x256xf32>
    %119 = arith.truncf %118 : vector<16x256xf32> to vector<16x256xbf16>
    %120 = arith.index_cast %c4_i32 : i32 to index
    %c0_41 = arith.constant 0 : index
    %c0_42 = arith.constant 0 : index
    %121 = vector.load %arg3[%120, %c0_41, %c0_42] : memref<10x256x128xbf16, #tpu.memory_space<vmem>>, vector<1x256x128xbf16>
    %122 = vector.shape_cast %121 : vector<1x256x128xbf16> to vector<256x128xbf16>
    %cst_43 = arith.constant dense<0.000000e+00> : vector<16x128xf32>
    %123 = tpu.matmul %119, %122, %cst_43 {dimension_numbers = #tpu.dot_dimension_numbers<[1], [0], [0], [1], [0, 0, 1, 1], [], []>} : vector<16x256xbf16>, vector<256x128xbf16>, vector<16x128xf32> -> vector<16x128xf32>
    %124 = arith.index_cast %c4_i32 : i32 to index
    %c0_44 = arith.constant 0 : index
    %125 = vector.load %arg4[%124, %c0_44] : memref<10x128xbf16, #tpu.memory_space<vmem>>, vector<1x128xbf16>
    %126 = vector.shape_cast %125 : vector<1x128xbf16> to vector<128xbf16>
    %127 = arith.extf %126 : vector<128xbf16> to vector<128xf32>
    %128 = vector.shape_cast %127 : vector<128xf32> to vector<1x128xf32>
    %129 = vector.broadcast %128 : vector<1x128xf32> to vector<16x128xf32>
    %130 = arith.addf %123, %129 : vector<16x128xf32>
    %c5_i32 = arith.constant 5 : i32
    %131 = arith.truncf %130 : vector<16x128xf32> to vector<16x128xbf16>
    %132 = arith.index_cast %c5_i32 : i32 to index
    %c0_45 = arith.constant 0 : index
    %c0_46 = arith.constant 0 : index
    %133 = vector.load %arg1[%132, %c0_45, %c0_46] : memref<10x128x256xbf16, #tpu.memory_space<vmem>>, vector<1x128x256xbf16>
    %134 = vector.shape_cast %133 : vector<1x128x256xbf16> to vector<128x256xbf16>
    %cst_47 = arith.constant dense<0.000000e+00> : vector<16x256xf32>
    %135 = tpu.matmul %131, %134, %cst_47 {dimension_numbers = #tpu.dot_dimension_numbers<[1], [0], [0], [1], [0, 0, 1, 1], [], []>} : vector<16x128xbf16>, vector<128x256xbf16>, vector<16x256xf32> -> vector<16x256xf32>
    %136 = arith.index_cast %c5_i32 : i32 to index
    %c0_48 = arith.constant 0 : index
    %137 = vector.load %arg2[%136, %c0_48] : memref<10x256xbf16, #tpu.memory_space<vmem>>, vector<1x256xbf16>
    %138 = vector.shape_cast %137 : vector<1x256xbf16> to vector<256xbf16>
    %139 = arith.extf %138 : vector<256xbf16> to vector<256xf32>
    %140 = vector.shape_cast %139 : vector<256xf32> to vector<1x256xf32>
    %141 = vector.broadcast %140 : vector<1x256xf32> to vector<16x256xf32>
    %142 = arith.addf %135, %141 : vector<16x256xf32>
    %cst_49 = arith.constant 0.000000e+00 : f32
    %143 = vector.broadcast %cst_49 : f32 to vector<16x256xf32>
    %144 = arith.maximumf %142, %143 : vector<16x256xf32>
    %145 = arith.truncf %144 : vector<16x256xf32> to vector<16x256xbf16>
    %146 = arith.index_cast %c5_i32 : i32 to index
    %c0_50 = arith.constant 0 : index
    %c0_51 = arith.constant 0 : index
    %147 = vector.load %arg3[%146, %c0_50, %c0_51] : memref<10x256x128xbf16, #tpu.memory_space<vmem>>, vector<1x256x128xbf16>
    %148 = vector.shape_cast %147 : vector<1x256x128xbf16> to vector<256x128xbf16>
    %cst_52 = arith.constant dense<0.000000e+00> : vector<16x128xf32>
    %149 = tpu.matmul %145, %148, %cst_52 {dimension_numbers = #tpu.dot_dimension_numbers<[1], [0], [0], [1], [0, 0, 1, 1], [], []>} : vector<16x256xbf16>, vector<256x128xbf16>, vector<16x128xf32> -> vector<16x128xf32>
    %150 = arith.index_cast %c5_i32 : i32 to index
    %c0_53 = arith.constant 0 : index
    %151 = vector.load %arg4[%150, %c0_53] : memref<10x128xbf16, #tpu.memory_space<vmem>>, vector<1x128xbf16>
    %152 = vector.shape_cast %151 : vector<1x128xbf16> to vector<128xbf16>
    %153 = arith.extf %152 : vector<128xbf16> to vector<128xf32>
    %154 = vector.shape_cast %153 : vector<128xf32> to vector<1x128xf32>
    %155 = vector.broadcast %154 : vector<1x128xf32> to vector<16x128xf32>
    %156 = arith.addf %149, %155 : vector<16x128xf32>
    %c6_i32 = arith.constant 6 : i32
    %157 = arith.truncf %156 : vector<16x128xf32> to vector<16x128xbf16>
    %158 = arith.index_cast %c6_i32 : i32 to index
    %c0_54 = arith.constant 0 : index
    %c0_55 = arith.constant 0 : index
    %159 = vector.load %arg1[%158, %c0_54, %c0_55] : memref<10x128x256xbf16, #tpu.memory_space<vmem>>, vector<1x128x256xbf16>
    %160 = vector.shape_cast %159 : vector<1x128x256xbf16> to vector<128x256xbf16>
    %cst_56 = arith.constant dense<0.000000e+00> : vector<16x256xf32>
    %161 = tpu.matmul %157, %160, %cst_56 {dimension_numbers = #tpu.dot_dimension_numbers<[1], [0], [0], [1], [0, 0, 1, 1], [], []>} : vector<16x128xbf16>, vector<128x256xbf16>, vector<16x256xf32> -> vector<16x256xf32>
    %162 = arith.index_cast %c6_i32 : i32 to index
    %c0_57 = arith.constant 0 : index
    %163 = vector.load %arg2[%162, %c0_57] : memref<10x256xbf16, #tpu.memory_space<vmem>>, vector<1x256xbf16>
    %164 = vector.shape_cast %163 : vector<1x256xbf16> to vector<256xbf16>
    %165 = arith.extf %164 : vector<256xbf16> to vector<256xf32>
    %166 = vector.shape_cast %165 : vector<256xf32> to vector<1x256xf32>
    %167 = vector.broadcast %166 : vector<1x256xf32> to vector<16x256xf32>
    %168 = arith.addf %161, %167 : vector<16x256xf32>
    %cst_58 = arith.constant 0.000000e+00 : f32
    %169 = vector.broadcast %cst_58 : f32 to vector<16x256xf32>
    %170 = arith.maximumf %168, %169 : vector<16x256xf32>
    %171 = arith.truncf %170 : vector<16x256xf32> to vector<16x256xbf16>
    %172 = arith.index_cast %c6_i32 : i32 to index
    %c0_59 = arith.constant 0 : index
    %c0_60 = arith.constant 0 : index
    %173 = vector.load %arg3[%172, %c0_59, %c0_60] : memref<10x256x128xbf16, #tpu.memory_space<vmem>>, vector<1x256x128xbf16>
    %174 = vector.shape_cast %173 : vector<1x256x128xbf16> to vector<256x128xbf16>
    %cst_61 = arith.constant dense<0.000000e+00> : vector<16x128xf32>
    %175 = tpu.matmul %171, %174, %cst_61 {dimension_numbers = #tpu.dot_dimension_numbers<[1], [0], [0], [1], [0, 0, 1, 1], [], []>} : vector<16x256xbf16>, vector<256x128xbf16>, vector<16x128xf32> -> vector<16x128xf32>
    %176 = arith.index_cast %c6_i32 : i32 to index
    %c0_62 = arith.constant 0 : index
    %177 = vector.load %arg4[%176, %c0_62] : memref<10x128xbf16, #tpu.memory_space<vmem>>, vector<1x128xbf16>
    %178 = vector.shape_cast %177 : vector<1x128xbf16> to vector<128xbf16>
    %179 = arith.extf %178 : vector<128xbf16> to vector<128xf32>
    %180 = vector.shape_cast %179 : vector<128xf32> to vector<1x128xf32>
    %181 = vector.broadcast %180 : vector<1x128xf32> to vector<16x128xf32>
    %182 = arith.addf %175, %181 : vector<16x128xf32>
    %c7_i32 = arith.constant 7 : i32
    %183 = arith.truncf %182 : vector<16x128xf32> to vector<16x128xbf16>
    %184 = arith.index_cast %c7_i32 : i32 to index
    %c0_63 = arith.constant 0 : index
    %c0_64 = arith.constant 0 : index
    %185 = vector.load %arg1[%184, %c0_63, %c0_64] : memref<10x128x256xbf16, #tpu.memory_space<vmem>>, vector<1x128x256xbf16>
    %186 = vector.shape_cast %185 : vector<1x128x256xbf16> to vector<128x256xbf16>
    %cst_65 = arith.constant dense<0.000000e+00> : vector<16x256xf32>
    %187 = tpu.matmul %183, %186, %cst_65 {dimension_numbers = #tpu.dot_dimension_numbers<[1], [0], [0], [1], [0, 0, 1, 1], [], []>} : vector<16x128xbf16>, vector<128x256xbf16>, vector<16x256xf32> -> vector<16x256xf32>
    %188 = arith.index_cast %c7_i32 : i32 to index
    %c0_66 = arith.constant 0 : index
    %189 = vector.load %arg2[%188, %c0_66] : memref<10x256xbf16, #tpu.memory_space<vmem>>, vector<1x256xbf16>
    %190 = vector.shape_cast %189 : vector<1x256xbf16> to vector<256xbf16>
    %191 = arith.extf %190 : vector<256xbf16> to vector<256xf32>
    %192 = vector.shape_cast %191 : vector<256xf32> to vector<1x256xf32>
    %193 = vector.broadcast %192 : vector<1x256xf32> to vector<16x256xf32>
    %194 = arith.addf %187, %193 : vector<16x256xf32>
    %cst_67 = arith.constant 0.000000e+00 : f32
    %195 = vector.broadcast %cst_67 : f32 to vector<16x256xf32>
    %196 = arith.maximumf %194, %195 : vector<16x256xf32>
    %197 = arith.truncf %196 : vector<16x256xf32> to vector<16x256xbf16>
    %198 = arith.index_cast %c7_i32 : i32 to index
    %c0_68 = arith.constant 0 : index
    %c0_69 = arith.constant 0 : index
    %199 = vector.load %arg3[%198, %c0_68, %c0_69] : memref<10x256x128xbf16, #tpu.memory_space<vmem>>, vector<1x256x128xbf16>
    %200 = vector.shape_cast %199 : vector<1x256x128xbf16> to vector<256x128xbf16>
    %cst_70 = arith.constant dense<0.000000e+00> : vector<16x128xf32>
    %201 = tpu.matmul %197, %200, %cst_70 {dimension_numbers = #tpu.dot_dimension_numbers<[1], [0], [0], [1], [0, 0, 1, 1], [], []>} : vector<16x256xbf16>, vector<256x128xbf16>, vector<16x128xf32> -> vector<16x128xf32>
    %202 = arith.index_cast %c7_i32 : i32 to index
    %c0_71 = arith.constant 0 : index
    %203 = vector.load %arg4[%202, %c0_71] : memref<10x128xbf16, #tpu.memory_space<vmem>>, vector<1x128xbf16>
    %204 = vector.shape_cast %203 : vector<1x128xbf16> to vector<128xbf16>
    %205 = arith.extf %204 : vector<128xbf16> to vector<128xf32>
    %206 = vector.shape_cast %205 : vector<128xf32> to vector<1x128xf32>
    %207 = vector.broadcast %206 : vector<1x128xf32> to vector<16x128xf32>
    %208 = arith.addf %201, %207 : vector<16x128xf32>
    %c8_i32 = arith.constant 8 : i32
    %209 = arith.truncf %208 : vector<16x128xf32> to vector<16x128xbf16>
    %210 = arith.index_cast %c8_i32 : i32 to index
    %c0_72 = arith.constant 0 : index
    %c0_73 = arith.constant 0 : index
    %211 = vector.load %arg1[%210, %c0_72, %c0_73] : memref<10x128x256xbf16, #tpu.memory_space<vmem>>, vector<1x128x256xbf16>
    %212 = vector.shape_cast %211 : vector<1x128x256xbf16> to vector<128x256xbf16>
    %cst_74 = arith.constant dense<0.000000e+00> : vector<16x256xf32>
    %213 = tpu.matmul %209, %212, %cst_74 {dimension_numbers = #tpu.dot_dimension_numbers<[1], [0], [0], [1], [0, 0, 1, 1], [], []>} : vector<16x128xbf16>, vector<128x256xbf16>, vector<16x256xf32> -> vector<16x256xf32>
    %214 = arith.index_cast %c8_i32 : i32 to index
    %c0_75 = arith.constant 0 : index
    %215 = vector.load %arg2[%214, %c0_75] : memref<10x256xbf16, #tpu.memory_space<vmem>>, vector<1x256xbf16>
    %216 = vector.shape_cast %215 : vector<1x256xbf16> to vector<256xbf16>
    %217 = arith.extf %216 : vector<256xbf16> to vector<256xf32>
    %218 = vector.shape_cast %217 : vector<256xf32> to vector<1x256xf32>
    %219 = vector.broadcast %218 : vector<1x256xf32> to vector<16x256xf32>
    %220 = arith.addf %213, %219 : vector<16x256xf32>
    %cst_76 = arith.constant 0.000000e+00 : f32
    %221 = vector.broadcast %cst_76 : f32 to vector<16x256xf32>
    %222 = arith.maximumf %220, %221 : vector<16x256xf32>
    %223 = arith.truncf %222 : vector<16x256xf32> to vector<16x256xbf16>
    %224 = arith.index_cast %c8_i32 : i32 to index
    %c0_77 = arith.constant 0 : index
    %c0_78 = arith.constant 0 : index
    %225 = vector.load %arg3[%224, %c0_77, %c0_78] : memref<10x256x128xbf16, #tpu.memory_space<vmem>>, vector<1x256x128xbf16>
    %226 = vector.shape_cast %225 : vector<1x256x128xbf16> to vector<256x128xbf16>
    %cst_79 = arith.constant dense<0.000000e+00> : vector<16x128xf32>
    %227 = tpu.matmul %223, %226, %cst_79 {dimension_numbers = #tpu.dot_dimension_numbers<[1], [0], [0], [1], [0, 0, 1, 1], [], []>} : vector<16x256xbf16>, vector<256x128xbf16>, vector<16x128xf32> -> vector<16x128xf32>
    %228 = arith.index_cast %c8_i32 : i32 to index
    %c0_80 = arith.constant 0 : index
    %229 = vector.load %arg4[%228, %c0_80] : memref<10x128xbf16, #tpu.memory_space<vmem>>, vector<1x128xbf16>
    %230 = vector.shape_cast %229 : vector<1x128xbf16> to vector<128xbf16>
    %231 = arith.extf %230 : vector<128xbf16> to vector<128xf32>
    %232 = vector.shape_cast %231 : vector<128xf32> to vector<1x128xf32>
    %233 = vector.broadcast %232 : vector<1x128xf32> to vector<16x128xf32>
    %234 = arith.addf %227, %233 : vector<16x128xf32>
    %c9_i32 = arith.constant 9 : i32
    %235 = arith.truncf %234 : vector<16x128xf32> to vector<16x128xbf16>
    %236 = arith.index_cast %c9_i32 : i32 to index
    %c0_81 = arith.constant 0 : index
    %c0_82 = arith.constant 0 : index
    %237 = vector.load %arg1[%236, %c0_81, %c0_82] : memref<10x128x256xbf16, #tpu.memory_space<vmem>>, vector<1x128x256xbf16>
    %238 = vector.shape_cast %237 : vector<1x128x256xbf16> to vector<128x256xbf16>
    %cst_83 = arith.constant dense<0.000000e+00> : vector<16x256xf32>
    %239 = tpu.matmul %235, %238, %cst_83 {dimension_numbers = #tpu.dot_dimension_numbers<[1], [0], [0], [1], [0, 0, 1, 1], [], []>} : vector<16x128xbf16>, vector<128x256xbf16>, vector<16x256xf32> -> vector<16x256xf32>
    %240 = arith.index_cast %c9_i32 : i32 to index
    %c0_84 = arith.constant 0 : index
    %241 = vector.load %arg2[%240, %c0_84] : memref<10x256xbf16, #tpu.memory_space<vmem>>, vector<1x256xbf16>
    %242 = vector.shape_cast %241 : vector<1x256xbf16> to vector<256xbf16>
    %243 = arith.extf %242 : vector<256xbf16> to vector<256xf32>
    %244 = vector.shape_cast %243 : vector<256xf32> to vector<1x256xf32>
    %245 = vector.broadcast %244 : vector<1x256xf32> to vector<16x256xf32>
    %246 = arith.addf %239, %245 : vector<16x256xf32>
    %cst_85 = arith.constant 0.000000e+00 : f32
    %247 = vector.broadcast %cst_85 : f32 to vector<16x256xf32>
    %248 = arith.maximumf %246, %247 : vector<16x256xf32>
    %249 = arith.truncf %248 : vector<16x256xf32> to vector<16x256xbf16>
    %250 = arith.index_cast %c9_i32 : i32 to index
    %c0_86 = arith.constant 0 : index
    %c0_87 = arith.constant 0 : index
    %251 = vector.load %arg3[%250, %c0_86, %c0_87] : memref<10x256x128xbf16, #tpu.memory_space<vmem>>, vector<1x256x128xbf16>
    %252 = vector.shape_cast %251 : vector<1x256x128xbf16> to vector<256x128xbf16>
    %cst_88 = arith.constant dense<0.000000e+00> : vector<16x128xf32>
    %253 = tpu.matmul %249, %252, %cst_88 {dimension_numbers = #tpu.dot_dimension_numbers<[1], [0], [0], [1], [0, 0, 1, 1], [], []>} : vector<16x256xbf16>, vector<256x128xbf16>, vector<16x128xf32> -> vector<16x128xf32>
    %254 = arith.index_cast %c9_i32 : i32 to index
    %c0_89 = arith.constant 0 : index
    %255 = vector.load %arg4[%254, %c0_89] : memref<10x128xbf16, #tpu.memory_space<vmem>>, vector<1x128xbf16>
    %256 = vector.shape_cast %255 : vector<1x128xbf16> to vector<128xbf16>
    %257 = arith.extf %256 : vector<128xbf16> to vector<128xf32>
    %258 = vector.shape_cast %257 : vector<128xf32> to vector<1x128xf32>
    %259 = vector.broadcast %258 : vector<1x128xf32> to vector<16x128xf32>
    %260 = arith.addf %253, %259 : vector<16x128xf32>
    %c10_i32 = arith.constant 10 : i32
    %c0_90 = arith.constant 0 : index
    %c0_91 = arith.constant 0 : index
    %261 = vector.load %arg5[%c0_90, %c0_91] : memref<16x128xf32, #tpu.memory_space<vmem>>, vector<16x128xf32>
    tpu.vector_store %arg5[%c0_90, %c0_91], %260 {strides = array<i32>} : memref<16x128xf32, #tpu.memory_space<vmem>>, vector<16x128xf32>,
    return
  }
}

</mosaic_0001>

<llo_original>
// kernel: tpu_custom_call.1
$region0: #{tpu_custom_call.1}
  #allocation0 [shape = 'u32[]', space=smem, size = 0x4, offset = 0x4, fixed_abs, tag = 'smem constant byte address 0x4 - core index']
  #allocation1 [shape = 'u32[72,128]{1,0:T(1,128)}', space=vmem, size = 0x9000, scoped, tag = 'internal scratch']
  %s0 = inlined_call_operand.hbm [shape: f32[16,128], index: 0, kind: input, shape index: {}]
  %s1 = inlined_call_operand.hbm [shape: bf16[10,128,256], index: 1, kind: input, shape index: {}]
  %s2 = inlined_call_operand.hbm [shape: bf16[10,256], index: 2, kind: input, shape index: {}]
  %s3 = inlined_call_operand.hbm [shape: bf16[10,256,128], index: 3, kind: input, shape index: {}]
  %s4 = inlined_call_operand.hbm [shape: bf16[10,128], index: 4, kind: input, shape index: {}]
  %s5 = inlined_call_operand.hbm [shape: f32[16,128], index: 5, kind: output, shape index: {}]
  %s6 = sld [smem:[#allocation0]]
  $region50: #{tpu_custom_call.1} parent=0
    _
  %s8 = ssub.s32 1, %s6
  %s9 = scalar_select 0, %s8, %s6
  $region1: #{tpu_custom_call.1} parent=0
    #allocation2 [shape = 'u8[8192]{0}', space=vmem, size = 0x2000, scoped, tag = 'input window, operand 0, single buffered']
    #allocation3 [shape = 's32[1]{0}', space=sflag, size = 0x4, scoped, tag = 'scoped memory for tpu_custom_call.1']
    #allocation4 [shape = 's32[1]{0}', space=sflag, size = 0x4, scoped, tag = 'scoped memory for tpu_custom_call.1']
    #allocation5 [shape = 'u8[655360]{0}', space=vmem, size = 0xa0000, scoped, tag = 'input window, operand 1, single buffered']
    #allocation6 [shape = 's32[1]{0}', space=sflag, size = 0x4, scoped, tag = 'scoped memory for tpu_custom_call.1']
    #allocation7 [shape = 'u8[8192]{0}', space=vmem, size = 0x2000, scoped, tag = 'input window, operand 2, single buffered']
    #allocation8 [shape = 'u8[655360]{0}', space=vmem, size = 0xa0000, scoped, tag = 'input window, operand 3, single buffered']
    #allocation9 [shape = 's32[1]{0}', space=sflag, size = 0x4, scoped, tag = 'scoped memory for tpu_custom_call.1']
    #allocation10 [shape = 'u8[4096]{0}', space=vmem, size = 0x1000, scoped, tag = 'input window, operand 4, single buffered']
    #allocation11 [shape = 'u8[8192]{0}', space=vmem, size = 0x2000, scoped, tag = 'output window, operand 0, single buffered']
    %10 = vsyncpa [#allocation3], 0
    %11 = vsyncpa [#allocation6], 0
    %12 = vsyncpa [#allocation9], 0
    %13 = vsyncpa [#allocation4], 0
    // Predicated region
    $region2: #{tpu_custom_call.1} parent=1 // pred_check
      _
    $region3: #{tpu_custom_call.1} parent=1 // pred_check_branch
      %15 = sbr.rel (0) target = $region5
    $region4: #{tpu_custom_call.1} parent=1 // pred_region
      %17 = vsyncadd [#allocation3], 0
      %s18 = sshll.u32 %s0, 4
      %s19 = int_to_ptr.hbm [resolvable:$true] %s18
      %s20 = sshll.u32 [#allocation2], 4
      %s21 = int_to_ptr.vmem [resolvable:$true] %s20
      %26 = dma.hbm_to_vmem [thread:$0]  %s19, 256, %s21, [#allocation3], 128, 128, 8
    $region5: #{tpu_custom_call.1} parent=1 // pred_fallthru
      _
    // Predicated region
    $region6: #{tpu_custom_call.1} parent=1 // pred_check
      _
    $region7: #{tpu_custom_call.1} parent=1 // pred_check_branch
      %28 = sbr.rel (0) target = $region9
    $region8: #{tpu_custom_call.1} parent=1 // pred_region
      %30 = vsyncadd [#allocation6], 0
      %s31 = sshll.u32 %s1, 4
      %s32 = int_to_ptr.hbm [resolvable:$true] %s31
      %s33 = sshll.u32 [#allocation5], 4
      %s34 = int_to_ptr.vmem [resolvable:$true] %s33
      %39 = dma.hbm_to_vmem [thread:$0]  %s32, 20480, %s34, [#allocation6], 128, 128, 8
    $region9: #{tpu_custom_call.1} parent=1 // pred_fallthru
      _
    // Predicated region
    $region10: #{tpu_custom_call.1} parent=1 // pred_check
      _
    $region11: #{tpu_custom_call.1} parent=1 // pred_check_branch
      %41 = sbr.rel (0) target = $region13
    $region12: #{tpu_custom_call.1} parent=1 // pred_region
      %43 = vsyncadd [#allocation6], 0
      %s44 = sshll.u32 %s2, 4
      %s45 = int_to_ptr.hbm [resolvable:$true] %s44
      %s46 = sshll.u32 [#allocation7], 4
      %s47 = int_to_ptr.vmem [resolvable:$true] %s46
      %52 = dma.hbm_to_vmem [thread:$0]  %s45, 256, %s47, [#allocation6], 128, 128, 8
    $region13: #{tpu_custom_call.1} parent=1 // pred_fallthru
      _
    // Predicated region
    $region14: #{tpu_custom_call.1} parent=1 // pred_check
      _
    $region15: #{tpu_custom_call.1} parent=1 // pred_check_branch
      %54 = sbr.rel (0) target = $region17
    $region16: #{tpu_custom_call.1} parent=1 // pred_region
      %56 = vsyncadd [#allocation9], 0
      %s57 = sshll.u32 %s3, 4
      %s58 = int_to_ptr.hbm [resolvable:$true] %s57
      %s59 = sshll.u32 [#allocation8], 4
      %s60 = int_to_ptr.vmem [resolvable:$true] %s59
      %65 = dma.hbm_to_vmem [thread:$0]  %s58, 20480, %s60, [#allocation9], 64, 64, 4
    $region17: #{tpu_custom_call.1} parent=1 // pred_fallthru
      _
    // Predicated region
    $region18: #{tpu_custom_call.1} parent=1 // pred_check
      _
    $region19: #{tpu_custom_call.1} parent=1 // pred_check_branch
      %67 = sbr.rel (0) target = $region21
    $region20: #{tpu_custom_call.1} parent=1 // pred_region
      %69 = vsyncadd [#allocation9], 0
      %s70 = sshll.u32 %s4, 4
      %s71 = int_to_ptr.hbm [resolvable:$true] %s70
      %s72 = sshll.u32 [#allocation10], 4
      %s73 = int_to_ptr.vmem [resolvable:$true] %s72
      %78 = dma.hbm_to_vmem [thread:$0]  %s71, 128, %s73, [#allocation9], 64, 64, 4
    $region21: #{tpu_custom_call.1} parent=1 // pred_fallthru
      _
    // Predicated region
    $region22: #{tpu_custom_call.1} parent=1 // pred_check
      _
    $region23: #{tpu_custom_call.1} parent=1 // pred_check_branch
      %80 = sbr.rel (0) target = $region25
    $region24: #{tpu_custom_call.1} parent=1 // pred_region
      %82 = dma.done [#allocation3], 256
    $region25: #{tpu_custom_call.1} parent=1 // pred_fallthru
      _
    // Predicated region
    $region26: #{tpu_custom_call.1} parent=1 // pred_check
      _
    $region27: #{tpu_custom_call.1} parent=1 // pred_check_branch
      %84 = sbr.rel (0) target = $region29
    $region28: #{tpu_custom_call.1} parent=1 // pred_region
      %86 = dma.done [#allocation6], 20480
    $region29: #{tpu_custom_call.1} parent=1 // pred_fallthru
      _
    // Predicated region
    $region30: #{tpu_custom_call.1} parent=1 // pred_check
      _
    $region31: #{tpu_custom_call.1} parent=1 // pred_check_branch
      %88 = sbr.rel (0) target = $region33
    $region32: #{tpu_custom_call.1} parent=1 // pred_region
      %90 = dma.done [#allocation6], 256
    $region33: #{tpu_custom_call.1} parent=1 // pred_fallthru
      _
    // Predicated region
    $region34: #{tpu_custom_call.1} parent=1 // pred_check
      _
    $region35: #{tpu_custom_call.1} parent=1 // pred_check_branch
      %92 = sbr.rel (0) target = $region37
    $region36: #{tpu_custom_call.1} parent=1 // pred_region
      %94 = dma.done [#allocation9], 20480
    $region37: #{tpu_custom_call.1} parent=1 // pred_fallthru
      _
    // Predicated region
    $region38: #{tpu_custom_call.1} parent=1 // pred_check
      _
    $region39: #{tpu_custom_call.1} parent=1 // pred_check_branch
      %96 = sbr.rel (0) target = $region41
    $region40: #{tpu_custom_call.1} parent=1 // pred_region
      %98 = dma.done [#allocation9], 128
    $region41: #{tpu_custom_call.1} parent=1 // pred_fallthru
      _
    %v99 = vld [vmem:[#allocation2] sm:$0xff]
    %v100 = vld [vmem:[#allocation2 + $0x8] sm:$0xff]
    %v101 = vpack.c.bf16 %v100, %v99
    %v102 = vld [vmem:[#allocation5] sm:$0xff]
    %v103 = vld [vmem:[#allocation5 + $0x8] sm:$0xff]
    %v104 = vld [vmem:[#allocation5 + $0x10] sm:$0xff]
    %v105 = vld [vmem:[#allocation5 + $0x18] sm:$0xff]
    %v106 = vld [vmem:[#allocation5 + $0x20] sm:$0xff]
    %v107 = vld [vmem:[#allocation5 + $0x28] sm:$0xff]
    %v108 = vld [vmem:[#allocation5 + $0x30] sm:$0xff]
    %v109 = vld [vmem:[#allocation5 + $0x38] sm:$0xff]
    %v110 = vld [vmem:[#allocation5 + $0x40] sm:$0xff]
    %v111 = vld [vmem:[#allocation5 + $0x48] sm:$0xff]
    %v112 = vld [vmem:[#allocation5 + $0x50] sm:$0xff]
    %v113 = vld [vmem:[#allocation5 + $0x58] sm:$0xff]
    %v114 = vld [vmem:[#allocation5 + $0x60] sm:$0xff]
    %v115 = vld [vmem:[#allocation5 + $0x68] sm:$0xff]
    %v116 = vld [vmem:[#allocation5 + $0x70] sm:$0xff]
    %v117 = vld [vmem:[#allocation5 + $0x78] sm:$0xff]
    %v118 = vld [vmem:[#allocation7] sm:$0x11]
    %v119 = vunpack.c.l.bf16 %v118
    %v120 = vunpack.c.h.bf16 %v118
    %v121 = vperm.slane %v119, 0
    %v122 = vperm.slane %v120, 0
    %v139 = vunpack.c.l.b16 %v102
    %v140 = vunpack.c.h.b16 %v102
    %v141 = vunpack.c.l.b16 %v103
    %v142 = vunpack.c.h.b16 %v103
    %v143 = vunpack.c.l.b16 %v104
    %v144 = vunpack.c.h.b16 %v104
    %v145 = vunpack.c.l.b16 %v105
    %v146 = vunpack.c.h.b16 %v105
    %v147 = vunpack.c.l.b16 %v106
    %v148 = vunpack.c.h.b16 %v106
    %v149 = vunpack.c.l.b16 %v107
    %v150 = vunpack.c.h.b16 %v107
    %v151 = vunpack.c.l.b16 %v108
    %v152 = vunpack.c.h.b16 %v108
    %v153 = vunpack.c.l.b16 %v109
    %v154 = vunpack.c.h.b16 %v109
    %v155 = vunpack.c.l.b16 %v110
    %v156 = vunpack.c.h.b16 %v110
    %v157 = vunpack.c.l.b16 %v111
    %v158 = vunpack.c.h.b16 %v111
    %v159 = vunpack.c.l.b16 %v112
    %v160 = vunpack.c.h.b16 %v112
    %v161 = vunpack.c.l.b16 %v113
    %v162 = vunpack.c.h.b16 %v113
    %v163 = vunpack.c.l.b16 %v114
    %v164 = vunpack.c.h.b16 %v114
    %v165 = vunpack.c.l.b16 %v115
    %v166 = vunpack.c.h.b16 %v115
    %v167 = vunpack.c.l.b16 %v116
    %v168 = vunpack.c.h.b16 %v116
    %v169 = vunpack.c.l.b16 %v117
    %v170 = vunpack.c.h.b16 %v117
    %v171 = vpack.c.b16 %v141, %v139
    %v172 = vpack.c.b16 %v142, %v140
    %v173 = vpack.c.b16 %v145, %v143
    %v174 = vpack.c.b16 %v146, %v144
    %v175 = vpack.c.b16 %v149, %v147
    %v176 = vpack.c.b16 %v150, %v148
    %v177 = vpack.c.b16 %v153, %v151
    %v178 = vpack.c.b16 %v154, %v152
    %v179 = vpack.c.b16 %v157, %v155
    %v180 = vpack.c.b16 %v158, %v156
    %v181 = vpack.c.b16 %v161, %v159
    %v182 = vpack.c.b16 %v162, %v160
    %v183 = vpack.c.b16 %v165, %v163
    %v184 = vpack.c.b16 %v166, %v164
    %v185 = vpack.c.b16 %v169, %v167
    %v186 = vpack.c.b16 %v170, %v168
    %203 = vmatpush.bf16.msra.mxu0 %v185
    %204 = vmatpush.bf16.msra.mxu0 %v183
    %205 = vmatpush.bf16.msra.mxu0 %v181
    %206 = vmatpush.bf16.msra.mxu0 %v179
    %207 = vmatpush.bf16.msra.mxu0 %v177
    %208 = vmatpush.bf16.msra.mxu0 %v175
    %209 = vmatpush.bf16.msra.mxu0 %v173
    %210 = vmatpush.bf16.msra.mxu0 %v171
    %211 = vmatmul.bf16.gmra.mxu0 %v101
    %v212 = vpop.f32.mrf.mxu0
    %v213 = vadd.f32 %v121, %v212
    %v214 = vpop.f32.mrf.mxu0
    %v215 = vadd.f32 %v121, %v214
    %216 = vdwg.mxu0
    %217 = vmatpush.bf16.msra.mxu0 %v186
    %218 = vmatpush.bf16.msra.mxu0 %v184
    %219 = vmatpush.bf16.msra.mxu0 %v182
    %220 = vmatpush.bf16.msra.mxu0 %v180
    %221 = vmatpush.bf16.msra.mxu0 %v178
    %222 = vmatpush.bf16.msra.mxu0 %v176
    %223 = vmatpush.bf16.msra.mxu0 %v174
    %224 = vmatpush.bf16.msra.mxu0 %v172
    %225 = vmatmul.bf16.gmra.mxu0 %v101
    %v226 = vpop.f32.mrf.mxu0
    %v227 = vadd.f32 %v122, %v226
    %v228 = vpop.f32.mrf.mxu0
    %v229 = vadd.f32 %v122, %v228
    %230 = vdwg.mxu0
    %v231 = vmax.f32 %v213, 0.0
    %v232 = vmax.f32 %v227, 0.0
    %v233 = vmax.f32 %v215, 0.0
    %v234 = vmax.f32 %v229, 0.0
    %v235 = vpack.c.bf16 %v233, %v231
    %v236 = vpack.c.bf16 %v234, %v232
    %v237 = vld [vmem:[#allocation8] sm:$0xf]
    %v238 = vld [vmem:[#allocation8 + $0x4] sm:$0xf]
    %v239 = vld [vmem:[#allocation8 + $0x8] sm:$0xf]
    %v240 = vld [vmem:[#allocation8 + $0xc] sm:$0xf]
    %v241 = vld [vmem:[#allocation8 + $0x10] sm:$0xf]
    %v242 = vld [vmem:[#allocation8 + $0x14] sm:$0xf]
    %v243 = vld [vmem:[#allocation8 + $0x18] sm:$0xf]
    %v244 = vld [vmem:[#allocation8 + $0x1c] sm:$0xf]
    %v245 = vld [vmem:[#allocation8 + $0x20] sm:$0xf]
    %v246 = vld [vmem:[#allocation8 + $0x24] sm:$0xf]
    %v247 = vld [vmem:[#allocation8 + $0x28] sm:$0xf]
    %v248 = vld [vmem:[#allocation8 + $0x2c] sm:$0xf]
    %v249 = vld [vmem:[#allocation8 + $0x30] sm:$0xf]
    %v250 = vld [vmem:[#allocation8 + $0x34] sm:$0xf]
    %v251 = vld [vmem:[#allocation8 + $0x38] sm:$0xf]
    %v252 = vld [vmem:[#allocation8 + $0x3c] sm:$0xf]
    %v253 = vld [vmem:[#allocation8 + $0x40] sm:$0xf]
    %v254 = vld [vmem:[#allocation8 + $0x44] sm:$0xf]
    %v255 = vld [vmem:[#allocation8 + $0x48] sm:$0xf]
    %v256 = vld [vmem:[#allocation8 + $0x4c] sm:$0xf]
    %v257 = vld [vmem:[#allocation8 + $0x50] sm:$0xf]
    %v258 = vld [vmem:[#allocation8 + $0x54] sm:$0xf]
    %v259 = vld [vmem:[#allocation8 + $0x58] sm:$0xf]
    %v260 = vld [vmem:[#allocation8 + $0x5c] sm:$0xf]
    %v261 = vld [vmem:[#allocation8 + $0x60] sm:$0xf]
    %v262 = vld [vmem:[#allocation8 + $0x64] sm:$0xf]
    %v263 = vld [vmem:[#allocation8 + $0x68] sm:$0xf]
    %v264 = vld [vmem:[#allocation8 + $0x6c] sm:$0xf]
    %v265 = vld [vmem:[#allocation8 + $0x70] sm:$0xf]
    %v266 = vld [vmem:[#allocation8 + $0x74] sm:$0xf]
    %v267 = vld [vmem:[#allocation8 + $0x78] sm:$0xf]
    %v268 = vld [vmem:[#allocation8 + $0x7c] sm:$0xf]
    %v269 = vld [vmem:[#allocation10] sm:$0x1]
    %v270 = vunpack.c.l.bf16 %v269
    %v271 = vperm.slane %v270, 0
    %v304 = vunpack.c.l.b16 %v237
    %v305 = vunpack.c.l.b16 %v238
    %v306 = vunpack.c.l.b16 %v239
    %v307 = vunpack.c.l.b16 %v240
    %v308 = vunpack.c.l.b16 %v241
    %v309 = vunpack.c.l.b16 %v242
    %v310 = vunpack.c.l.b16 %v243
    %v311 = vunpack.c.l.b16 %v244
    %v312 = vunpack.c.l.b16 %v245
    %v313 = vunpack.c.l.b16 %v246
    %v314 = vunpack.c.l.b16 %v247
    %v315 = vunpack.c.l.b16 %v248
    %v316 = vunpack.c.l.b16 %v249
    %v317 = vunpack.c.l.b16 %v250
    %v318 = vunpack.c.l.b16 %v251
    %v319 = vunpack.c.l.b16 %v252
    %v320 = vunpack.c.l.b16 %v253
    %v321 = vunpack.c.l.b16 %v254
    %v322 = vunpack.c.l.b16 %v255
    %v323 = vunpack.c.l.b16 %v256
    %v324 = vunpack.c.l.b16 %v257
    %v325 = vunpack.c.l.b16 %v258
    %v326 = vunpack.c.l.b16 %v259
    %v327 = vunpack.c.l.b16 %v260
    %v328 = vunpack.c.l.b16 %v261
    %v329 = vunpack.c.l.b16 %v262
    %v330 = vunpack.c.l.b16 %v263
    %v331 = vunpack.c.l.b16 %v264
    %v332 = vunpack.c.l.b16 %v265
    %v333 = vunpack.c.l.b16 %v266
    %v334 = vunpack.c.l.b16 %v267
    %v335 = vunpack.c.l.b16 %v268
    %v336 = vpack.c.b16 %v305, %v304
    %v337 = vpack.c.b16 %v307, %v306
    %v338 = vpack.c.b16 %v309, %v308
    %v339 = vpack.c.b16 %v311, %v310
    %v340 = vpack.c.b16 %v313, %v312
    %v341 = vpack.c.b16 %v315, %v314
    %v342 = vpack.c.b16 %v317, %v316
    %v343 = vpack.c.b16 %v319, %v318
    %v344 = vpack.c.b16 %v321, %v320
    %v345 = vpack.c.b16 %v323, %v322
    %v346 = vpack.c.b16 %v325, %v324
    %v347 = vpack.c.b16 %v327, %v326
    %v348 = vpack.c.b16 %v329, %v328
    %v349 = vpack.c.b16 %v331, %v330
    %v350 = vpack.c.b16 %v333, %v332
    %v351 = vpack.c.b16 %v335, %v334
    %368 = vmatpush.bf16.msra.mxu0 %v343
    %369 = vmatpush.bf16.msra.mxu0 %v342
    %370 = vmatpush.bf16.msra.mxu0 %v341
    %371 = vmatpush.bf16.msra.mxu0 %v340
    %372 = vmatpush.bf16.msra.mxu0 %v339
    %373 = vmatpush.bf16.msra.mxu0 %v338
    %374 = vmatpush.bf16.msra.mxu0 %v337
    %375 = vmatpush.bf16.msra.mxu0 %v336
    %376 = vmatmul.bf16.gmra.mxu0 %v235
    %v377 = vpop.f32.mrf.mxu0
    %v378 = vadd.f32 %v271, %v377
    %v379 = vpop.f32.mrf.mxu0
    %v380 = vadd.f32 %v271, %v379
    %381 = vdwg.mxu0
    %382 = vmatpush.bf16.msra.mxu0 %v351
    %383 = vmatpush.bf16.msra.mxu0 %v350
    %384 = vmatpush.bf16.msra.mxu0 %v349
    %385 = vmatpush.bf16.msra.mxu0 %v348
    %386 = vmatpush.bf16.msra.mxu0 %v347
    %387 = vmatpush.bf16.msra.mxu0 %v346
    %388 = vmatpush.bf16.msra.mxu0 %v345
    %389 = vmatpush.bf16.msra.mxu0 %v344
    %390 = vmatmul.bf16.gmra.mxu0 %v236
    %v391 = vpop.f32.mrf.mxu0
    %v392 = vadd.f32 %v378, %v391
    %v393 = vpop.f32.mrf.mxu0
    %v394 = vadd.f32 %v380, %v393
    %395 = vdwg.mxu0
    %v396 = vpack.c.bf16 %v394, %v392
    %s397 = scalar_lea.vmem [#allocation5], 128
    %v398 = vld [vmem:[%s397] sm:$0xff]
    %v399 = vld [vmem:[%s397 + $0x8] sm:$0xff]
    %v400 = vld [vmem:[%s397 + $0x10] sm:$0xff]
    %v401 = vld [vmem:[%s397 + $0x18] sm:$0xff]
    %v402 = vld [vmem:[%s397 + $0x20] sm:$0xff]
    %v403 = vld [vmem:[%s397 + $0x28] sm:$0xff]
    %v404 = vld [vmem:[%s397 + $0x30] sm:$0xff]
    %v405 = vld [vmem:[%s397 + $0x38] sm:$0xff]
    %v406 = vld [vmem:[%s397 + $0x40] sm:$0xff]
    %v407 = vld [vmem:[%s397 + $0x48] sm:$0xff]
    %v408 = vld [vmem:[%s397 + $0x50] sm:$0xff]
    %v409 = vld [vmem:[%s397 + $0x58] sm:$0xff]
    %v410 = vld [vmem:[%s397 + $0x60] sm:$0xff]
    %v411 = vld [vmem:[%s397 + $0x68] sm:$0xff]
    %v412 = vld [vmem:[%s397 + $0x70] sm:$0xff]
    %v413 = vld [vmem:[%s397 + $0x78] sm:$0xff]
    %v414 = vperm.slane %v119, 1
    %v415 = vperm.slane %v120, 1
    %v432 = vunpack.c.l.b16 %v398
    %v433 = vunpack.c.h.b16 %v398
    %v434 = vunpack.c.l.b16 %v399
    %v435 = vunpack.c.h.b16 %v399
    %v436 = vunpack.c.l.b16 %v400
    %v437 = vunpack.c.h.b16 %v400
    %v438 = vunpack.c.l.b16 %v401
    %v439 = vunpack.c.h.b16 %v401
    %v440 = vunpack.c.l.b16 %v402
    %v441 = vunpack.c.h.b16 %v402
    %v442 = vunpack.c.l.b16 %v403
    %v443 = vunpack.c.h.b16 %v403
    %v444 = vunpack.c.l.b16 %v404
    %v445 = vunpack.c.h.b16 %v404
    %v446 = vunpack.c.l.b16 %v405
    %v447 = vunpack.c.h.b16 %v405
    %v448 = vunpack.c.l.b16 %v406
    %v449 = vunpack.c.h.b16 %v406
    %v450 = vunpack.c.l.b16 %v407
    %v451 = vunpack.c.h.b16 %v407
    %v452 = vunpack.c.l.b16 %v408
    %v453 = vunpack.c.h.b16 %v408
    %v454 = vunpack.c.l.b16 %v409
    %v455 = vunpack.c.h.b16 %v409
    %v456 = vunpack.c.l.b16 %v410
    %v457 = vunpack.c.h.b16 %v410
    %v458 = vunpack.c.l.b16 %v411
    %v459 = vunpack.c.h.b16 %v411
    %v460 = vunpack.c.l.b16 %v412
    %v461 = vunpack.c.h.b16 %v412
    %v462 = vunpack.c.l.b16 %v413
    %v463 = vunpack.c.h.b16 %v413
    %v464 = vpack.c.b16 %v434, %v432
    %v465 = vpack.c.b16 %v435, %v433
    %v466 = vpack.c.b16 %v438, %v436
    %v467 = vpack.c.b16 %v439, %v437
    %v468 = vpack.c.b16 %v442, %v440
    %v469 = vpack.c.b16 %v443, %v441
    %v470 = vpack.c.b16 %v446, %v444
    %v471 = vpack.c.b16 %v447, %v445
    %v472 = vpack.c.b16 %v450, %v448
    %v473 = vpack.c.b16 %v451, %v449
    %v474 = vpack.c.b16 %v454, %v452
    %v475 = vpack.c.b16 %v455, %v453
    %v476 = vpack.c.b16 %v458, %v456
    %v477 = vpack.c.b16 %v459, %v457
    %v478 = vpack.c.b16 %v462, %v460
    %v479 = vpack.c.b16 %v463, %v461
    %496 = vmatpush.bf16.msra.mxu0 %v478
    %497 = vmatpush.bf16.msra.mxu0 %v476
    %498 = vmatpush.bf16.msra.mxu0 %v474
    %499 = vmatpush.bf16.msra.mxu0 %v472
    %500 = vmatpush.bf16.msra.mxu0 %v470
    %501 = vmatpush.bf16.msra.mxu0 %v468
    %502 = vmatpush.bf16.msra.mxu0 %v466
    %503 = vmatpush.bf16.msra.mxu0 %v464
    %504 = vmatmul.bf16.gmra.mxu0 %v396
    %v505 = vpop.f32.mrf.mxu0
    %v506 = vadd.f32 %v414, %v505
    %v507 = vpop.f32.mrf.mxu0
    %v508 = vadd.f32 %v414, %v507
    %509 = vdwg.mxu0
    %510 = vmatpush.bf16.msra.mxu0 %v479
    %511 = vmatpush.bf16.msra.mxu0 %v477
    %512 = vmatpush.bf16.msra.mxu0 %v475
    %513 = vmatpush.bf16.msra.mxu0 %v473
    %514 = vmatpush.bf16.msra.mxu0 %v471
    %515 = vmatpush.bf16.msra.mxu0 %v469
    %516 = vmatpush.bf16.msra.mxu0 %v467
    %517 = vmatpush.bf16.msra.mxu0 %v465
    %518 = vmatmul.bf16.gmra.mxu0 %v396
    %v519 = vpop.f32.mrf.mxu0
    %v520 = vadd.f32 %v415, %v519
    %v521 = vpop.f32.mrf.mxu0
    %v522 = vadd.f32 %v415, %v521
    %523 = vdwg.mxu0
    %v524 = vmax.f32 %v506, 0.0
    %v525 = vmax.f32 %v520, 0.0
    %v526 = vmax.f32 %v508, 0.0
    %v527 = vmax.f32 %v522, 0.0
    %v528 = vpack.c.bf16 %v526, %v524
    %v529 = vpack.c.bf16 %v527, %v525
    %s530 = scalar_lea.vmem [#allocation8], 128
    %v531 = vld [vmem:[%s530] sm:$0xf]
    %v532 = vld [vmem:[%s530 + $0x4] sm:$0xf]
    %v533 = vld [vmem:[%s530 + $0x8] sm:$0xf]
    %v534 = vld [vmem:[%s530 + $0xc] sm:$0xf]
    %v535 = vld [vmem:[%s530 + $0x10] sm:$0xf]
    %v536 = vld [vmem:[%s530 + $0x14] sm:$0xf]
    %v537 = vld [vmem:[%s530 + $0x18] sm:$0xf]
    %v538 = vld [vmem:[%s530 + $0x1c] sm:$0xf]
    %v539 = vld [vmem:[%s530 + $0x20] sm:$0xf]
    %v540 = vld [vmem:[%s530 + $0x24] sm:$0xf]
    %v541 = vld [vmem:[%s530 + $0x28] sm:$0xf]
    %v542 = vld [vmem:[%s530 + $0x2c] sm:$0xf]
    %v543 = vld [vmem:[%s530 + $0x30] sm:$0xf]
    %v544 = vld [vmem:[%s530 + $0x34] sm:$0xf]
    %v545 = vld [vmem:[%s530 + $0x38] sm:$0xf]
    %v546 = vld [vmem:[%s530 + $0x3c] sm:$0xf]
    %v547 = vld [vmem:[%s530 + $0x40] sm:$0xf]
    %v548 = vld [vmem:[%s530 + $0x44] sm:$0xf]
    %v549 = vld [vmem:[%s530 + $0x48] sm:$0xf]
    %v550 = vld [vmem:[%s530 + $0x4c] sm:$0xf]
    %v551 = vld [vmem:[%s530 + $0x50] sm:$0xf]
    %v552 = vld [vmem:[%s530 + $0x54] sm:$0xf]
    %v553 = vld [vmem:[%s530 + $0x58] sm:$0xf]
    %v554 = vld [vmem:[%s530 + $0x5c] sm:$0xf]
    %v555 = vld [vmem:[%s530 + $0x60] sm:$0xf]
    %v556 = vld [vmem:[%s530 + $0x64] sm:$0xf]
    %v557 = vld [vmem:[%s530 + $0x68] sm:$0xf]
    %v558 = vld [vmem:[%s530 + $0x6c] sm:$0xf]
    %v559 = vld [vmem:[%s530 + $0x70] sm:$0xf]
    %v560 = vld [vmem:[%s530 + $0x74] sm:$0xf]
    %v561 = vld [vmem:[%s530 + $0x78] sm:$0xf]
    %v562 = vld [vmem:[%s530 + $0x7c] sm:$0xf]
    %v563 = vperm.slane %v270, 1
    %v596 = vunpack.c.l.b16 %v531
    %v597 = vunpack.c.l.b16 %v532
    %v598 = vunpack.c.l.b16 %v533
    %v599 = vunpack.c.l.b16 %v534
    %v600 = vunpack.c.l.b16 %v535
    %v601 = vunpack.c.l.b16 %v536
    %v602 = vunpack.c.l.b16 %v537
    %v603 = vunpack.c.l.b16 %v538
    %v604 = vunpack.c.l.b16 %v539
    %v605 = vunpack.c.l.b16 %v540
    %v606 = vunpack.c.l.b16 %v541
    %v607 = vunpack.c.l.b16 %v542
    %v608 = vunpack.c.l.b16 %v543
    %v609 = vunpack.c.l.b16 %v544
    %v610 = vunpack.c.l.b16 %v545
    %v611 = vunpack.c.l.b16 %v546
    %v612 = vunpack.c.l.b16 %v547
    %v613 = vunpack.c.l.b16 %v548
    %v614 = vunpack.c.l.b16 %v549
    %v615 = vunpack.c.l.b16 %v550
    %v616 = vunpack.c.l.b16 %v551
    %v617 = vunpack.c.l.b16 %v552
    %v618 = vunpack.c.l.b16 %v553
    %v619 = vunpack.c.l.b16 %v554
    %v620 = vunpack.c.l.b16 %v555
    %v621 = vunpack.c.l.b16 %v556
    %v622 = vunpack.c.l.b16 %v557
    %v623 = vunpack.c.l.b16 %v558
    %v624 = vunpack.c.l.b16 %v559
    %v625 = vunpack.c.l.b16 %v560
    %v626 = vunpack.c.l.b16 %v561
    %v627 = vunpack.c.l.b16 %v562
    %v628 = vpack.c.b16 %v597, %v596
    %v629 = vpack.c.b16 %v599, %v598
    %v630 = vpack.c.b16 %v601, %v600
    %v631 = vpack.c.b16 %v603, %v602
    %v632 = vpack.c.b16 %v605, %v604
    %v633 = vpack.c.b16 %v607, %v606
    %v634 = vpack.c.b16 %v609, %v608
    %v635 = vpack.c.b16 %v611, %v610
    %v636 = vpack.c.b16 %v613, %v612
    %v637 = vpack.c.b16 %v615, %v614
    %v638 = vpack.c.b16 %v617, %v616
    %v639 = vpack.c.b16 %v619, %v618
    %v640 = vpack.c.b16 %v621, %v620
    %v641 = vpack.c.b16 %v623, %v622
    %v642 = vpack.c.b16 %v625, %v624
    %v643 = vpack.c.b16 %v627, %v626
    %660 = vmatpush.bf16.msra.mxu0 %v635
    %661 = vmatpush.bf16.msra.mxu0 %v634
    %662 = vmatpush.bf16.msra.mxu0 %v633
    %663 = vmatpush.bf16.msra.mxu0 %v632
    %664 = vmatpush.bf16.msra.mxu0 %v631
    %665 = vmatpush.bf16.msra.mxu0 %v630
    %666 = vmatpush.bf16.msra.mxu0 %v629
    %667 = vmatpush.bf16.msra.mxu0 %v628
    %668 = vmatmul.bf16.gmra.mxu0 %v528
    %v669 = vpop.f32.mrf.mxu0
    %v670 = vadd.f32 %v563, %v669
    %v671 = vpop.f32.mrf.mxu0
    %v672 = vadd.f32 %v563, %v671
    %673 = vdwg.mxu0
    %674 = vmatpush.bf16.msra.mxu0 %v643
    %675 = vmatpush.bf16.msra.mxu0 %v642
    %676 = vmatpush.bf16.msra.mxu0 %v641
    %677 = vmatpush.bf16.msra.mxu0 %v640
    %678 = vmatpush.bf16.msra.mxu0 %v639
    %679 = vmatpush.bf16.msra.mxu0 %v638
    %680 = vmatpush.bf16.msra.mxu0 %v637
    %681 = vmatpush.bf16.msra.mxu0 %v636
    %682 = vmatmul.bf16.gmra.mxu0 %v529
    %v683 = vpop.f32.mrf.mxu0
    %v684 = vadd.f32 %v670, %v683
    %v685 = vpop.f32.mrf.mxu0
    %v686 = vadd.f32 %v672, %v685
    %687 = vdwg.mxu0
    %v688 = vpack.c.bf16 %v686, %v684
    %s689 = scalar_lea.vmem [#allocation5], 256
    %v690 = vld [vmem:[%s689] sm:$0xff]
    %v691 = vld [vmem:[%s689 + $0x8] sm:$0xff]
    %v692 = vld [vmem:[%s689 + $0x10] sm:$0xff]
    %v693 = vld [vmem:[%s689 + $0x18] sm:$0xff]
    %v694 = vld [vmem:[%s689 + $0x20] sm:$0xff]
    %v695 = vld [vmem:[%s689 + $0x28] sm:$0xff]
    %v696 = vld [vmem:[%s689 + $0x30] sm:$0xff]
    %v697 = vld [vmem:[%s689 + $0x38] sm:$0xff]
    %v698 = vld [vmem:[%s689 + $0x40] sm:$0xff]
    %v699 = vld [vmem:[%s689 + $0x48] sm:$0xff]
    %v700 = vld [vmem:[%s689 + $0x50] sm:$0xff]
    %v701 = vld [vmem:[%s689 + $0x58] sm:$0xff]
    %v702 = vld [vmem:[%s689 + $0x60] sm:$0xff]
    %v703 = vld [vmem:[%s689 + $0x68] sm:$0xff]
    %v704 = vld [vmem:[%s689 + $0x70] sm:$0xff]
    %v705 = vld [vmem:[%s689 + $0x78] sm:$0xff]
    %v706 = vld [vmem:[#allocation7] sm:$0x22]
    %v707 = vunpack.c.l.bf16 %v706
    %v708 = vunpack.c.h.bf16 %v706
    %v709 = vperm.slane %v707, 2
    %v710 = vperm.slane %v708, 2
    %v727 = vunpack.c.l.b16 %v690
    %v728 = vunpack.c.h.b16 %v690
    %v729 = vunpack.c.l.b16 %v691
    %v730 = vunpack.c.h.b16 %v691
    %v731 = vunpack.c.l.b16 %v692
    %v732 = vunpack.c.h.b16 %v692
    %v733 = vunpack.c.l.b16 %v693
    %v734 = vunpack.c.h.b16 %v693
    %v735 = vunpack.c.l.b16 %v694
    %v736 = vunpack.c.h.b16 %v694
    %v737 = vunpack.c.l.b16 %v695
    %v738 = vunpack.c.h.b16 %v695
    %v739 = vunpack.c.l.b16 %v696
    %v740 = vunpack.c.h.b16 %v696
    %v741 = vunpack.c.l.b16 %v697
    %v742 = vunpack.c.h.b16 %v697
    %v743 = vunpack.c.l.b16 %v698
    %v744 = vunpack.c.h.b16 %v698
    %v745 = vunpack.c.l.b16 %v699
    %v746 = vunpack.c.h.b16 %v699
    %v747 = vunpack.c.l.b16 %v700
    %v748 = vunpack.c.h.b16 %v700
    %v749 = vunpack.c.l.b16 %v701
    %v750 = vunpack.c.h.b16 %v701
    %v751 = vunpack.c.l.b16 %v702
    %v752 = vunpack.c.h.b16 %v702
    %v753 = vunpack.c.l.b16 %v703
    %v754 = vunpack.c.h.b16 %v703
    %v755 = vunpack.c.l.b16 %v704
    %v756 = vunpack.c.h.b16 %v704
    %v757 = vunpack.c.l.b16 %v705
    %v758 = vunpack.c.h.b16 %v705
    %v759 = vpack.c.b16 %v729, %v727
    %v760 = vpack.c.b16 %v730, %v728
    %v761 = vpack.c.b16 %v733, %v731
    %v762 = vpack.c.b16 %v734, %v732
    %v763 = vpack.c.b16 %v737, %v735
    %v764 = vpack.c.b16 %v738, %v736
    %v765 = vpack.c.b16 %v741, %v739
    %v766 = vpack.c.b16 %v742, %v740
    %v767 = vpack.c.b16 %v745, %v743
    %v768 = vpack.c.b16 %v746, %v744
    %v769 = vpack.c.b16 %v749, %v747
    %v770 = vpack.c.b16 %v750, %v748
    %v771 = vpack.c.b16 %v753, %v751
    %v772 = vpack.c.b16 %v754, %v752
    %v773 = vpack.c.b16 %v757, %v755
    %v774 = vpack.c.b16 %v758, %v756
    %791 = vmatpush.bf16.msra.mxu0 %v773
    %792 = vmatpush.bf16.msra.mxu0 %v771
    %793 = vmatpush.bf16.msra.mxu0 %v769
    %794 = vmatpush.bf16.msra.mxu0 %v767
    %795 = vmatpush.bf16.msra.mxu0 %v765
    %796 = vmatpush.bf16.msra.mxu0 %v763
    %797 = vmatpush.bf16.msra.mxu0 %v761
    %798 = vmatpush.bf16.msra.mxu0 %v759
    %799 = vmatmul.bf16.gmra.mxu0 %v688
    %v800 = vpop.f32.mrf.mxu0
    %v801 = vadd.f32 %v709, %v800
    %v802 = vpop.f32.mrf.mxu0
    %v803 = vadd.f32 %v709, %v802
    %804 = vdwg.mxu0
    %805 = vmatpush.bf16.msra.mxu0 %v774
    %806 = vmatpush.bf16.msra.mxu0 %v772
    %807 = vmatpush.bf16.msra.mxu0 %v770
    %808 = vmatpush.bf16.msra.mxu0 %v768
    %809 = vmatpush.bf16.msra.mxu0 %v766
    %810 = vmatpush.bf16.msra.mxu0 %v764
    %811 = vmatpush.bf16.msra.mxu0 %v762
    %812 = vmatpush.bf16.msra.mxu0 %v760
    %813 = vmatmul.bf16.gmra.mxu0 %v688
    %v814 = vpop.f32.mrf.mxu0
    %v815 = vadd.f32 %v710, %v814
    %v816 = vpop.f32.mrf.mxu0
    %v817 = vadd.f32 %v710, %v816
    %818 = vdwg.mxu0
    %v819 = vmax.f32 %v801, 0.0
    %v820 = vmax.f32 %v815, 0.0
    %v821 = vmax.f32 %v803, 0.0
    %v822 = vmax.f32 %v817, 0.0
    %v823 = vpack.c.bf16 %v821, %v819
    %v824 = vpack.c.bf16 %v822, %v820
    %s825 = scalar_lea.vmem [#allocation8], 256
    %v826 = vld [vmem:[%s825] sm:$0xf]
    %v827 = vld [vmem:[%s825 + $0x4] sm:$0xf]
    %v828 = vld [vmem:[%s825 + $0x8] sm:$0xf]
    %v829 = vld [vmem:[%s825 + $0xc] sm:$0xf]
    %v830 = vld [vmem:[%s825 + $0x10] sm:$0xf]
    %v831 = vld [vmem:[%s825 + $0x14] sm:$0xf]
    %v832 = vld [vmem:[%s825 + $0x18] sm:$0xf]
    %v833 = vld [vmem:[%s825 + $0x1c] sm:$0xf]
    %v834 = vld [vmem:[%s825 + $0x20] sm:$0xf]
    %v835 = vld [vmem:[%s825 + $0x24] sm:$0xf]
    %v836 = vld [vmem:[%s825 + $0x28] sm:$0xf]
    %v837 = vld [vmem:[%s825 + $0x2c] sm:$0xf]
    %v838 = vld [vmem:[%s825 + $0x30] sm:$0xf]
    %v839 = vld [vmem:[%s825 + $0x34] sm:$0xf]
    %v840 = vld [vmem:[%s825 + $0x38] sm:$0xf]
    %v841 = vld [vmem:[%s825 + $0x3c] sm:$0xf]
    %v842 = vld [vmem:[%s825 + $0x40] sm:$0xf]
    %v843 = vld [vmem:[%s825 + $0x44] sm:$0xf]
    %v844 = vld [vmem:[%s825 + $0x48] sm:$0xf]
    %v845 = vld [vmem:[%s825 + $0x4c] sm:$0xf]
    %v846 = vld [vmem:[%s825 + $0x50] sm:$0xf]
    %v847 = vld [vmem:[%s825 + $0x54] sm:$0xf]
    %v848 = vld [vmem:[%s825 + $0x58] sm:$0xf]
    %v849 = vld [vmem:[%s825 + $0x5c] sm:$0xf]
    %v850 = vld [vmem:[%s825 + $0x60] sm:$0xf]
    %v851 = vld [vmem:[%s825 + $0x64] sm:$0xf]
    %v852 = vld [vmem:[%s825 + $0x68] sm:$0xf]
    %v853 = vld [vmem:[%s825 + $0x6c] sm:$0xf]
    %v854 = vld [vmem:[%s825 + $0x70] sm:$0xf]
    %v855 = vld [vmem:[%s825 + $0x74] sm:$0xf]
    %v856 = vld [vmem:[%s825 + $0x78] sm:$0xf]
    %v857 = vld [vmem:[%s825 + $0x7c] sm:$0xf]
    %v858 = vld [vmem:[#allocation10] sm:$0x2]
    %v859 = vunpack.c.l.bf16 %v858
    %v860 = vperm.slane %v859, 2
    %v893 = vunpack.c.l.b16 %v826
    %v894 = vunpack.c.l.b16 %v827
    %v895 = vunpack.c.l.b16 %v828
    %v896 = vunpack.c.l.b16 %v829
    %v897 = vunpack.c.l.b16 %v830
    %v898 = vunpack.c.l.b16 %v831
    %v899 = vunpack.c.l.b16 %v832
    %v900 = vunpack.c.l.b16 %v833
    %v901 = vunpack.c.l.b16 %v834
    %v902 = vunpack.c.l.b16 %v835
    %v903 = vunpack.c.l.b16 %v836
    %v904 = vunpack.c.l.b16 %v837
    %v905 = vunpack.c.l.b16 %v838
    %v906 = vunpack.c.l.b16 %v839
    %v907 = vunpack.c.l.b16 %v840
    %v908 = vunpack.c.l.b16 %v841
    %v909 = vunpack.c.l.b16 %v842
    %v910 = vunpack.c.l.b16 %v843
    %v911 = vunpack.c.l.b16 %v844
    %v912 = vunpack.c.l.b16 %v845
    %v913 = vunpack.c.l.b16 %v846
    %v914 = vunpack.c.l.b16 %v847
    %v915 = vunpack.c.l.b16 %v848
    %v916 = vunpack.c.l.b16 %v849
    %v917 = vunpack.c.l.b16 %v850
    %v918 = vunpack.c.l.b16 %v851
    %v919 = vunpack.c.l.b16 %v852
    %v920 = vunpack.c.l.b16 %v853
    %v921 = vunpack.c.l.b16 %v854
    %v922 = vunpack.c.l.b16 %v855
    %v923 = vunpack.c.l.b16 %v856
    %v924 = vunpack.c.l.b16 %v857
    %v925 = vpack.c.b16 %v894, %v893
    %v926 = vpack.c.b16 %v896, %v895
    %v927 = vpack.c.b16 %v898, %v897
    %v928 = vpack.c.b16 %v900, %v899
    %v929 = vpack.c.b16 %v902, %v901
    %v930 = vpack.c.b16 %v904, %v903
    %v931 = vpack.c.b16 %v906, %v905
    %v932 = vpack.c.b16 %v908, %v907
    %v933 = vpack.c.b16 %v910, %v909
    %v934 = vpack.c.b16 %v912, %v911
    %v935 = vpack.c.b16 %v914, %v913
    %v936 = vpack.c.b16 %v916, %v915
    %v937 = vpack.c.b16 %v918, %v917
    %v938 = vpack.c.b16 %v920, %v919
    %v939 = vpack.c.b16 %v922, %v921
    %v940 = vpack.c.b16 %v924, %v923
    %957 = vmatpush.bf16.msra.mxu0 %v932
    %958 = vmatpush.bf16.msra.mxu0 %v931
    %959 = vmatpush.bf16.msra.mxu0 %v930
    %960 = vmatpush.bf16.msra.mxu0 %v929
    %961 = vmatpush.bf16.msra.mxu0 %v928
    %962 = vmatpush.bf16.msra.mxu0 %v927
    %963 = vmatpush.bf16.msra.mxu0 %v926
    %964 = vmatpush.bf16.msra.mxu0 %v925
    %965 = vmatmul.bf16.gmra.mxu0 %v823
    %v966 = vpop.f32.mrf.mxu0
    %v967 = vadd.f32 %v860, %v966
    %v968 = vpop.f32.mrf.mxu0
    %v969 = vadd.f32 %v860, %v968
    %970 = vdwg.mxu0
    %971 = vmatpush.bf16.msra.mxu0 %v940
    %972 = vmatpush.bf16.msra.mxu0 %v939
    %973 = vmatpush.bf16.msra.mxu0 %v938
    %974 = vmatpush.bf16.msra.mxu0 %v937
    %975 = vmatpush.bf16.msra.mxu0 %v936
    %976 = vmatpush.bf16.msra.mxu0 %v935
    %977 = vmatpush.bf16.msra.mxu0 %v934
    %978 = vmatpush.bf16.msra.mxu0 %v933
    %979 = vmatmul.bf16.gmra.mxu0 %v824
    %v980 = vpop.f32.mrf.mxu0
    %v981 = vadd.f32 %v967, %v980
    %v982 = vpop.f32.mrf.mxu0
    %v983 = vadd.f32 %v969, %v982
    %984 = vdwg.mxu0
    %v985 = vpack.c.bf16 %v983, %v981
    %s986 = scalar_lea.vmem [#allocation5], 384
    %v987 = vld [vmem:[%s986] sm:$0xff]
    %v988 = vld [vmem:[%s986 + $0x8] sm:$0xff]
    %v989 = vld [vmem:[%s986 + $0x10] sm:$0xff]
    %v990 = vld [vmem:[%s986 + $0x18] sm:$0xff]
    %v991 = vld [vmem:[%s986 + $0x20] sm:$0xff]
    %v992 = vld [vmem:[%s986 + $0x28] sm:$0xff]
    %v993 = vld [vmem:[%s986 + $0x30] sm:$0xff]
    %v994 = vld [vmem:[%s986 + $0x38] sm:$0xff]
    %v995 = vld [vmem:[%s986 + $0x40] sm:$0xff]
    %v996 = vld [vmem:[%s986 + $0x48] sm:$0xff]
    %v997 = vld [vmem:[%s986 + $0x50] sm:$0xff]
    %v998 = vld [vmem:[%s986 + $0x58] sm:$0xff]
    %v999 = vld [vmem:[%s986 + $0x60] sm:$0xff]
    %v1000 = vld [vmem:[%s986 + $0x68] sm:$0xff]
    %v1001 = vld [vmem:[%s986 + $0x70] sm:$0xff]
    %v1002 = vld [vmem:[%s986 + $0x78] sm:$0xff]
    %v1003 = vperm.slane %v707, 3
    %v1004 = vperm.slane %v708, 3
    %v1021 = vunpack.c.l.b16 %v987
    %v1022 = vunpack.c.h.b16 %v987
    %v1023 = vunpack.c.l.b16 %v988
    %v1024 = vunpack.c.h.b16 %v988
    %v1025 = vunpack.c.l.b16 %v989
    %v1026 = vunpack.c.h.b16 %v989
    %v1027 = vunpack.c.l.b16 %v990
    %v1028 = vunpack.c.h.b16 %v990
    %v1029 = vunpack.c.l.b16 %v991
    %v1030 = vunpack.c.h.b16 %v991
    %v1031 = vunpack.c.l.b16 %v992
    %v1032 = vunpack.c.h.b16 %v992
    %v1033 = vunpack.c.l.b16 %v993
    %v1034 = vunpack.c.h.b16 %v993
    %v1035 = vunpack.c.l.b16 %v994
    %v1036 = vunpack.c.h.b16 %v994
    %v1037 = vunpack.c.l.b16 %v995
    %v1038 = vunpack.c.h.b16 %v995
    %v1039 = vunpack.c.l.b16 %v996
    %v1040 = vunpack.c.h.b16 %v996
    %v1041 = vunpack.c.l.b16 %v997
    %v1042 = vunpack.c.h.b16 %v997
    %v1043 = vunpack.c.l.b16 %v998
    %v1044 = vunpack.c.h.b16 %v998
    %v1045 = vunpack.c.l.b16 %v999
    %v1046 = vunpack.c.h.b16 %v999
    %v1047 = vunpack.c.l.b16 %v1000
    %v1048 = vunpack.c.h.b16 %v1000
    %v1049 = vunpack.c.l.b16 %v1001
    %v1050 = vunpack.c.h.b16 %v1001
    %v1051 = vunpack.c.l.b16 %v1002
    %v1052 = vunpack.c.h.b16 %v1002
    %v1053 = vpack.c.b16 %v1023, %v1021
    %v1054 = vpack.c.b16 %v1024, %v1022
    %v1055 = vpack.c.b16 %v1027, %v1025
    %v1056 = vpack.c.b16 %v1028, %v1026
    %v1057 = vpack.c.b16 %v1031, %v1029
    %v1058 = vpack.c.b16 %v1032, %v1030
    %v1059 = vpack.c.b16 %v1035, %v1033
    %v1060 = vpack.c.b16 %v1036, %v1034
    %v1061 = vpack.c.b16 %v1039, %v1037
    %v1062 = vpack.c.b16 %v1040, %v1038
    %v1063 = vpack.c.b16 %v1043, %v1041
    %v1064 = vpack.c.b16 %v1044, %v1042
    %v1065 = vpack.c.b16 %v1047, %v1045
    %v1066 = vpack.c.b16 %v1048, %v1046
    %v1067 = vpack.c.b16 %v1051, %v1049
    %v1068 = vpack.c.b16 %v1052, %v1050
    %1085 = vmatpush.bf16.msra.mxu0 %v1067
    %1086 = vmatpush.bf16.msra.mxu0 %v1065
    %1087 = vmatpush.bf16.msra.mxu0 %v1063
    %1088 = vmatpush.bf16.msra.mxu0 %v1061
    %1089 = vmatpush.bf16.msra.mxu0 %v1059
    %1090 = vmatpush.bf16.msra.mxu0 %v1057
    %1091 = vmatpush.bf16.msra.mxu0 %v1055
    %1092 = vmatpush.bf16.msra.mxu0 %v1053
    %1093 = vmatmul.bf16.gmra.mxu0 %v985
    %v1094 = vpop.f32.mrf.mxu0
    %v1095 = vadd.f32 %v1003, %v1094
    %v1096 = vpop.f32.mrf.mxu0
    %v1097 = vadd.f32 %v1003, %v1096
    %1098 = vdwg.mxu0
    %1099 = vmatpush.bf16.msra.mxu0 %v1068
    %1100 = vmatpush.bf16.msra.mxu0 %v1066
    %1101 = vmatpush.bf16.msra.mxu0 %v1064
    %1102 = vmatpush.bf16.msra.mxu0 %v1062
    %1103 = vmatpush.bf16.msra.mxu0 %v1060
    %1104 = vmatpush.bf16.msra.mxu0 %v1058
    %1105 = vmatpush.bf16.msra.mxu0 %v1056
    %1106 = vmatpush.bf16.msra.mxu0 %v1054
    %1107 = vmatmul.bf16.gmra.mxu0 %v985
    %v1108 = vpop.f32.mrf.mxu0
    %v1109 = vadd.f32 %v1004, %v1108
    %v1110 = vpop.f32.mrf.mxu0
    %v1111 = vadd.f32 %v1004, %v1110
    %1112 = vdwg.mxu0
    %v1113 = vmax.f32 %v1095, 0.0
    %v1114 = vmax.f32 %v1109, 0.0
    %v1115 = vmax.f32 %v1097, 0.0
    %v1116 = vmax.f32 %v1111, 0.0
    %v1117 = vpack.c.bf16 %v1115, %v1113
    %v1118 = vpack.c.bf16 %v1116, %v1114
    %s1119 = scalar_lea.vmem [#allocation8], 384
    %v1120 = vld [vmem:[%s1119] sm:$0xf]
    %v1121 = vld [vmem:[%s1119 + $0x4] sm:$0xf]
    %v1122 = vld [vmem:[%s1119 + $0x8] sm:$0xf]
    %v1123 = vld [vmem:[%s1119 + $0xc] sm:$0xf]
    %v1124 = vld [vmem:[%s1119 + $0x10] sm:$0xf]
    %v1125 = vld [vmem:[%s1119 + $0x14] sm:$0xf]
    %v1126 = vld [vmem:[%s1119 + $0x18] sm:$0xf]
    %v1127 = vld [vmem:[%s1119 + $0x1c] sm:$0xf]
    %v1128 = vld [vmem:[%s1119 + $0x20] sm:$0xf]
    %v1129 = vld [vmem:[%s1119 + $0x24] sm:$0xf]
    %v1130 = vld [vmem:[%s1119 + $0x28] sm:$0xf]
    %v1131 = vld [vmem:[%s1119 + $0x2c] sm:$0xf]
    %v1132 = vld [vmem:[%s1119 + $0x30] sm:$0xf]
    %v1133 = vld [vmem:[%s1119 + $0x34] sm:$0xf]
    %v1134 = vld [vmem:[%s1119 + $0x38] sm:$0xf]
    %v1135 = vld [vmem:[%s1119 + $0x3c] sm:$0xf]
    %v1136 = vld [vmem:[%s1119 + $0x40] sm:$0xf]
    %v1137 = vld [vmem:[%s1119 + $0x44] sm:$0xf]
    %v1138 = vld [vmem:[%s1119 + $0x48] sm:$0xf]
    %v1139 = vld [vmem:[%s1119 + $0x4c] sm:$0xf]
    %v1140 = vld [vmem:[%s1119 + $0x50] sm:$0xf]
    %v1141 = vld [vmem:[%s1119 + $0x54] sm:$0xf]
    %v1142 = vld [vmem:[%s1119 + $0x58] sm:$0xf]
    %v1143 = vld [vmem:[%s1119 + $0x5c] sm:$0xf]
    %v1144 = vld [vmem:[%s1119 + $0x60] sm:$0xf]
    %v1145 = vld [vmem:[%s1119 + $0x64] sm:$0xf]
    %v1146 = vld [vmem:[%s1119 + $0x68] sm:$0xf]
    %v1147 = vld [vmem:[%s1119 + $0x6c] sm:$0xf]
    %v1148 = vld [vmem:[%s1119 + $0x70] sm:$0xf]
    %v1149 = vld [vmem:[%s1119 + $0x74] sm:$0xf]
    %v1150 = vld [vmem:[%s1119 + $0x78] sm:$0xf]
    %v1151 = vld [vmem:[%s1119 + $0x7c] sm:$0xf]
    %v1152 = vperm.slane %v859, 3
    %v1185 = vunpack.c.l.b16 %v1120
    %v1186 = vunpack.c.l.b16 %v1121
    %v1187 = vunpack.c.l.b16 %v1122
    %v1188 = vunpack.c.l.b16 %v1123
    %v1189 = vunpack.c.l.b16 %v1124
    %v1190 = vunpack.c.l.b16 %v1125
    %v1191 = vunpack.c.l.b16 %v1126
    %v1192 = vunpack.c.l.b16 %v1127
    %v1193 = vunpack.c.l.b16 %v1128
    %v1194 = vunpack.c.l.b16 %v1129
    %v1195 = vunpack.c.l.b16 %v1130
    %v1196 = vunpack.c.l.b16 %v1131
    %v1197 = vunpack.c.l.b16 %v1132
    %v1198 = vunpack.c.l.b16 %v1133
    %v1199 = vunpack.c.l.b16 %v1134
    %v1200 = vunpack.c.l.b16 %v1135
    %v1201 = vunpack.c.l.b16 %v1136
    %v1202 = vunpack.c.l.b16 %v1137
    %v1203 = vunpack.c.l.b16 %v1138
    %v1204 = vunpack.c.l.b16 %v1139
    %v1205 = vunpack.c.l.b16 %v1140
    %v1206 = vunpack.c.l.b16 %v1141
    %v1207 = vunpack.c.l.b16 %v1142
    %v1208 = vunpack.c.l.b16 %v1143
    %v1209 = vunpack.c.l.b16 %v1144
    %v1210 = vunpack.c.l.b16 %v1145
    %v1211 = vunpack.c.l.b16 %v1146
    %v1212 = vunpack.c.l.b16 %v1147
    %v1213 = vunpack.c.l.b16 %v1148
    %v1214 = vunpack.c.l.b16 %v1149
    %v1215 = vunpack.c.l.b16 %v1150
    %v1216 = vunpack.c.l.b16 %v1151
    %v1217 = vpack.c.b16 %v1186, %v1185
    %v1218 = vpack.c.b16 %v1188, %v1187
    %v1219 = vpack.c.b16 %v1190, %v1189
    %v1220 = vpack.c.b16 %v1192, %v1191
    %v1221 = vpack.c.b16 %v1194, %v1193
    %v1222 = vpack.c.b16 %v1196, %v1195
    %v1223 = vpack.c.b16 %v1198, %v1197
    %v1224 = vpack.c.b16 %v1200, %v1199
    %v1225 = vpack.c.b16 %v1202, %v1201
    %v1226 = vpack.c.b16 %v1204, %v1203
    %v1227 = vpack.c.b16 %v1206, %v1205
    %v1228 = vpack.c.b16 %v1208, %v1207
    %v1229 = vpack.c.b16 %v1210, %v1209
    %v1230 = vpack.c.b16 %v1212, %v1211
    %v1231 = vpack.c.b16 %v1214, %v1213
    %v1232 = vpack.c.b16 %v1216, %v1215
    %1249 = vmatpush.bf16.msra.mxu0 %v1224
    %1250 = vmatpush.bf16.msra.mxu0 %v1223
    %1251 = vmatpush.bf16.msra.mxu0 %v1222
    %1252 = vmatpush.bf16.msra.mxu0 %v1221
    %1253 = vmatpush.bf16.msra.mxu0 %v1220
    %1254 = vmatpush.bf16.msra.mxu0 %v1219
    %1255 = vmatpush.bf16.msra.mxu0 %v1218
    %1256 = vmatpush.bf16.msra.mxu0 %v1217
    %1257 = vmatmul.bf16.gmra.mxu0 %v1117
    %v1258 = vpop.f32.mrf.mxu0
    %v1259 = vadd.f32 %v1152, %v1258
    %v1260 = vpop.f32.mrf.mxu0
    %v1261 = vadd.f32 %v1152, %v1260
    %1262 = vdwg.mxu0
    %1263 = vmatpush.bf16.msra.mxu0 %v1232
    %1264 = vmatpush.bf16.msra.mxu0 %v1231
    %1265 = vmatpush.bf16.msra.mxu0 %v1230
    %1266 = vmatpush.bf16.msra.mxu0 %v1229
    %1267 = vmatpush.bf16.msra.mxu0 %v1228
    %1268 = vmatpush.bf16.msra.mxu0 %v1227
    %1269 = vmatpush.bf16.msra.mxu0 %v1226
    %1270 = vmatpush.bf16.msra.mxu0 %v1225
    %1271 = vmatmul.bf16.gmra.mxu0 %v1118
    %v1272 = vpop.f32.mrf.mxu0
    %v1273 = vadd.f32 %v1259, %v1272
    %v1274 = vpop.f32.mrf.mxu0
    %v1275 = vadd.f32 %v1261, %v1274
    %1276 = vdwg.mxu0
    %v1277 = vpack.c.bf16 %v1275, %v1273
    %s1278 = scalar_lea.vmem [#allocation5], 512
    %v1279 = vld [vmem:[%s1278] sm:$0xff]
    %v1280 = vld [vmem:[%s1278 + $0x8] sm:$0xff]
    %v1281 = vld [vmem:[%s1278 + $0x10] sm:$0xff]
    %v1282 = vld [vmem:[%s1278 + $0x18] sm:$0xff]
    %v1283 = vld [vmem:[%s1278 + $0x20] sm:$0xff]
    %v1284 = vld [vmem:[%s1278 + $0x28] sm:$0xff]
    %v1285 = vld [vmem:[%s1278 + $0x30] sm:$0xff]
    %v1286 = vld [vmem:[%s1278 + $0x38] sm:$0xff]
    %v1287 = vld [vmem:[%s1278 + $0x40] sm:$0xff]
    %v1288 = vld [vmem:[%s1278 + $0x48] sm:$0xff]
    %v1289 = vld [vmem:[%s1278 + $0x50] sm:$0xff]
    %v1290 = vld [vmem:[%s1278 + $0x58] sm:$0xff]
    %v1291 = vld [vmem:[%s1278 + $0x60] sm:$0xff]
    %v1292 = vld [vmem:[%s1278 + $0x68] sm:$0xff]
    %v1293 = vld [vmem:[%s1278 + $0x70] sm:$0xff]
    %v1294 = vld [vmem:[%s1278 + $0x78] sm:$0xff]
    %v1295 = vld [vmem:[#allocation7] sm:$0x44]
    %v1296 = vunpack.c.l.bf16 %v1295
    %v1297 = vunpack.c.h.bf16 %v1295
    %v1298 = vperm.slane %v1296, 4
    %v1299 = vperm.slane %v1297, 4
    %v1316 = vunpack.c.l.b16 %v1279
    %v1317 = vunpack.c.h.b16 %v1279
    %v1318 = vunpack.c.l.b16 %v1280
    %v1319 = vunpack.c.h.b16 %v1280
    %v1320 = vunpack.c.l.b16 %v1281
    %v1321 = vunpack.c.h.b16 %v1281
    %v1322 = vunpack.c.l.b16 %v1282
    %v1323 = vunpack.c.h.b16 %v1282
    %v1324 = vunpack.c.l.b16 %v1283
    %v1325 = vunpack.c.h.b16 %v1283
    %v1326 = vunpack.c.l.b16 %v1284
    %v1327 = vunpack.c.h.b16 %v1284
    %v1328 = vunpack.c.l.b16 %v1285
    %v1329 = vunpack.c.h.b16 %v1285
    %v1330 = vunpack.c.l.b16 %v1286
    %v1331 = vunpack.c.h.b16 %v1286
    %v1332 = vunpack.c.l.b16 %v1287
    %v1333 = vunpack.c.h.b16 %v1287
    %v1334 = vunpack.c.l.b16 %v1288
    %v1335 = vunpack.c.h.b16 %v1288
    %v1336 = vunpack.c.l.b16 %v1289
    %v1337 = vunpack.c.h.b16 %v1289
    %v1338 = vunpack.c.l.b16 %v1290
    %v1339 = vunpack.c.h.b16 %v1290
    %v1340 = vunpack.c.l.b16 %v1291
    %v1341 = vunpack.c.h.b16 %v1291
    %v1342 = vunpack.c.l.b16 %v1292
    %v1343 = vunpack.c.h.b16 %v1292
    %v1344 = vunpack.c.l.b16 %v1293
    %v1345 = vunpack.c.h.b16 %v1293
    %v1346 = vunpack.c.l.b16 %v1294
    %v1347 = vunpack.c.h.b16 %v1294
    %v1348 = vpack.c.b16 %v1318, %v1316
    %v1349 = vpack.c.b16 %v1319, %v1317
    %v1350 = vpack.c.b16 %v1322, %v1320
    %v1351 = vpack.c.b16 %v1323, %v1321
    %v1352 = vpack.c.b16 %v1326, %v1324
    %v1353 = vpack.c.b16 %v1327, %v1325
    %v1354 = vpack.c.b16 %v1330, %v1328
    %v1355 = vpack.c.b16 %v1331, %v1329
    %v1356 = vpack.c.b16 %v1334, %v1332
    %v1357 = vpack.c.b16 %v1335, %v1333
    %v1358 = vpack.c.b16 %v1338, %v1336
    %v1359 = vpack.c.b16 %v1339, %v1337
    %v1360 = vpack.c.b16 %v1342, %v1340
    %v1361 = vpack.c.b16 %v1343, %v1341
    %v1362 = vpack.c.b16 %v1346, %v1344
    %v1363 = vpack.c.b16 %v1347, %v1345
    %1380 = vmatpush.bf16.msra.mxu0 %v1362
    %1381 = vmatpush.bf16.msra.mxu0 %v1360
    %1382 = vmatpush.bf16.msra.mxu0 %v1358
    %1383 = vmatpush.bf16.msra.mxu0 %v1356
    %1384 = vmatpush.bf16.msra.mxu0 %v1354
    %1385 = vmatpush.bf16.msra.mxu0 %v1352
    %1386 = vmatpush.bf16.msra.mxu0 %v1350
    %1387 = vmatpush.bf16.msra.mxu0 %v1348
    %1388 = vmatmul.bf16.gmra.mxu0 %v1277
    %v1389 = vpop.f32.mrf.mxu0
    %v1390 = vadd.f32 %v1298, %v1389
    %v1391 = vpop.f32.mrf.mxu0
    %v1392 = vadd.f32 %v1298, %v1391
    %1393 = vdwg.mxu0
    %1394 = vmatpush.bf16.msra.mxu0 %v1363
    %1395 = vmatpush.bf16.msra.mxu0 %v1361
    %1396 = vmatpush.bf16.msra.mxu0 %v1359
    %1397 = vmatpush.bf16.msra.mxu0 %v1357
    %1398 = vmatpush.bf16.msra.mxu0 %v1355
    %1399 = vmatpush.bf16.msra.mxu0 %v1353
    %1400 = vmatpush.bf16.msra.mxu0 %v1351
    %1401 = vmatpush.bf16.msra.mxu0 %v1349
    %1402 = vmatmul.bf16.gmra.mxu0 %v1277
    %v1403 = vpop.f32.mrf.mxu0
    %v1404 = vadd.f32 %v1299, %v1403
    %v1405 = vpop.f32.mrf.mxu0
    %v1406 = vadd.f32 %v1299, %v1405
    %1407 = vdwg.mxu0
    %v1408 = vmax.f32 %v1390, 0.0
    %v1409 = vmax.f32 %v1404, 0.0
    %v1410 = vmax.f32 %v1392, 0.0
    %v1411 = vmax.f32 %v1406, 0.0
    %v1412 = vpack.c.bf16 %v1410, %v1408
    %v1413 = vpack.c.bf16 %v1411, %v1409
    %s1414 = scalar_lea.vmem [#allocation8], 512
    %v1415 = vld [vmem:[%s1414] sm:$0xf]
    %v1416 = vld [vmem:[%s1414 + $0x4] sm:$0xf]
    %v1417 = vld [vmem:[%s1414 + $0x8] sm:$0xf]
    %v1418 = vld [vmem:[%s1414 + $0xc] sm:$0xf]
    %v1419 = vld [vmem:[%s1414 + $0x10] sm:$0xf]
    %v1420 = vld [vmem:[%s1414 + $0x14] sm:$0xf]
    %v1421 = vld [vmem:[%s1414 + $0x18] sm:$0xf]
    %v1422 = vld [vmem:[%s1414 + $0x1c] sm:$0xf]
    %v1423 = vld [vmem:[%s1414 + $0x20] sm:$0xf]
    %v1424 = vld [vmem:[%s1414 + $0x24] sm:$0xf]
    %v1425 = vld [vmem:[%s1414 + $0x28] sm:$0xf]
    %v1426 = vld [vmem:[%s1414 + $0x2c] sm:$0xf]
    %v1427 = vld [vmem:[%s1414 + $0x30] sm:$0xf]
    %v1428 = vld [vmem:[%s1414 + $0x34] sm:$0xf]
    %v1429 = vld [vmem:[%s1414 + $0x38] sm:$0xf]
    %v1430 = vld [vmem:[%s1414 + $0x3c] sm:$0xf]
    %v1431 = vld [vmem:[%s1414 + $0x40] sm:$0xf]
    %v1432 = vld [vmem:[%s1414 + $0x44] sm:$0xf]
    %v1433 = vld [vmem:[%s1414 + $0x48] sm:$0xf]
    %v1434 = vld [vmem:[%s1414 + $0x4c] sm:$0xf]
    %v1435 = vld [vmem:[%s1414 + $0x50] sm:$0xf]
    %v1436 = vld [vmem:[%s1414 + $0x54] sm:$0xf]
    %v1437 = vld [vmem:[%s1414 + $0x58] sm:$0xf]
    %v1438 = vld [vmem:[%s1414 + $0x5c] sm:$0xf]
    %v1439 = vld [vmem:[%s1414 + $0x60] sm:$0xf]
    %v1440 = vld [vmem:[%s1414 + $0x64] sm:$0xf]
    %v1441 = vld [vmem:[%s1414 + $0x68] sm:$0xf]
    %v1442 = vld [vmem:[%s1414 + $0x6c] sm:$0xf]
    %v1443 = vld [vmem:[%s1414 + $0x70] sm:$0xf]
    %v1444 = vld [vmem:[%s1414 + $0x74] sm:$0xf]
    %v1445 = vld [vmem:[%s1414 + $0x78] sm:$0xf]
    %v1446 = vld [vmem:[%s1414 + $0x7c] sm:$0xf]
    %v1447 = vld [vmem:[#allocation10] sm:$0x4]
    %v1448 = vunpack.c.l.bf16 %v1447
    %v1449 = vperm.slane %v1448, 4
    %v1482 = vunpack.c.l.b16 %v1415
    %v1483 = vunpack.c.l.b16 %v1416
    %v1484 = vunpack.c.l.b16 %v1417
    %v1485 = vunpack.c.l.b16 %v1418
    %v1486 = vunpack.c.l.b16 %v1419
    %v1487 = vunpack.c.l.b16 %v1420
    %v1488 = vunpack.c.l.b16 %v1421
    %v1489 = vunpack.c.l.b16 %v1422
    %v1490 = vunpack.c.l.b16 %v1423
    %v1491 = vunpack.c.l.b16 %v1424
    %v1492 = vunpack.c.l.b16 %v1425
    %v1493 = vunpack.c.l.b16 %v1426
    %v1494 = vunpack.c.l.b16 %v1427
    %v1495 = vunpack.c.l.b16 %v1428
    %v1496 = vunpack.c.l.b16 %v1429
    %v1497 = vunpack.c.l.b16 %v1430
    %v1498 = vunpack.c.l.b16 %v1431
    %v1499 = vunpack.c.l.b16 %v1432
    %v1500 = vunpack.c.l.b16 %v1433
    %v1501 = vunpack.c.l.b16 %v1434
    %v1502 = vunpack.c.l.b16 %v1435
    %v1503 = vunpack.c.l.b16 %v1436
    %v1504 = vunpack.c.l.b16 %v1437
    %v1505 = vunpack.c.l.b16 %v1438
    %v1506 = vunpack.c.l.b16 %v1439
    %v1507 = vunpack.c.l.b16 %v1440
    %v1508 = vunpack.c.l.b16 %v1441
    %v1509 = vunpack.c.l.b16 %v1442
    %v1510 = vunpack.c.l.b16 %v1443
    %v1511 = vunpack.c.l.b16 %v1444
    %v1512 = vunpack.c.l.b16 %v1445
    %v1513 = vunpack.c.l.b16 %v1446
    %v1514 = vpack.c.b16 %v1483, %v1482
    %v1515 = vpack.c.b16 %v1485, %v1484
    %v1516 = vpack.c.b16 %v1487, %v1486
    %v1517 = vpack.c.b16 %v1489, %v1488
    %v1518 = vpack.c.b16 %v1491, %v1490
    %v1519 = vpack.c.b16 %v1493, %v1492
    %v1520 = vpack.c.b16 %v1495, %v1494
    %v1521 = vpack.c.b16 %v1497, %v1496
    %v1522 = vpack.c.b16 %v1499, %v1498
    %v1523 = vpack.c.b16 %v1501, %v1500
    %v1524 = vpack.c.b16 %v1503, %v1502
    %v1525 = vpack.c.b16 %v1505, %v1504
    %v1526 = vpack.c.b16 %v1507, %v1506
    %v1527 = vpack.c.b16 %v1509, %v1508
    %v1528 = vpack.c.b16 %v1511, %v1510
    %v1529 = vpack.c.b16 %v1513, %v1512
    %1546 = vmatpush.bf16.msra.mxu0 %v1521
    %1547 = vmatpush.bf16.msra.mxu0 %v1520
    %1548 = vmatpush.bf16.msra.mxu0 %v1519
    %1549 = vmatpush.bf16.msra.mxu0 %v1518
    %1550 = vmatpush.bf16.msra.mxu0 %v1517
    %1551 = vmatpush.bf16.msra.mxu0 %v1516
    %1552 = vmatpush.bf16.msra.mxu0 %v1515
    %1553 = vmatpush.bf16.msra.mxu0 %v1514
    %1554 = vmatmul.bf16.gmra.mxu0 %v1412
    %v1555 = vpop.f32.mrf.mxu0
    %v1556 = vadd.f32 %v1449, %v1555
    %v1557 = vpop.f32.mrf.mxu0
    %v1558 = vadd.f32 %v1449, %v1557
    %1559 = vdwg.mxu0
    %1560 = vmatpush.bf16.msra.mxu0 %v1529
    %1561 = vmatpush.bf16.msra.mxu0 %v1528
    %1562 = vmatpush.bf16.msra.mxu0 %v1527
    %1563 = vmatpush.bf16.msra.mxu0 %v1526
    %1564 = vmatpush.bf16.msra.mxu0 %v1525
    %1565 = vmatpush.bf16.msra.mxu0 %v1524
    %1566 = vmatpush.bf16.msra.mxu0 %v1523
    %1567 = vmatpush.bf16.msra.mxu0 %v1522
    %1568 = vmatmul.bf16.gmra.mxu0 %v1413
    %v1569 = vpop.f32.mrf.mxu0
    %v1570 = vadd.f32 %v1556, %v1569
    %v1571 = vpop.f32.mrf.mxu0
    %v1572 = vadd.f32 %v1558, %v1571
    %1573 = vdwg.mxu0
    %v1574 = vpack.c.bf16 %v1572, %v1570
    %s1575 = scalar_lea.vmem [#allocation5], 640
    %v1576 = vld [vmem:[%s1575] sm:$0xff]
    %v1577 = vld [vmem:[%s1575 + $0x8] sm:$0xff]
    %v1578 = vld [vmem:[%s1575 + $0x10] sm:$0xff]
    %v1579 = vld [vmem:[%s1575 + $0x18] sm:$0xff]
    %v1580 = vld [vmem:[%s1575 + $0x20] sm:$0xff]
    %v1581 = vld [vmem:[%s1575 + $0x28] sm:$0xff]
    %v1582 = vld [vmem:[%s1575 + $0x30] sm:$0xff]
    %v1583 = vld [vmem:[%s1575 + $0x38] sm:$0xff]
    %v1584 = vld [vmem:[%s1575 + $0x40] sm:$0xff]
    %v1585 = vld [vmem:[%s1575 + $0x48] sm:$0xff]
    %v1586 = vld [vmem:[%s1575 + $0x50] sm:$0xff]
    %v1587 = vld [vmem:[%s1575 + $0x58] sm:$0xff]
    %v1588 = vld [vmem:[%s1575 + $0x60] sm:$0xff]
    %v1589 = vld [vmem:[%s1575 + $0x68] sm:$0xff]
    %v1590 = vld [vmem:[%s1575 + $0x70] sm:$0xff]
    %v1591 = vld [vmem:[%s1575 + $0x78] sm:$0xff]
    %v1592 = vperm.slane %v1296, 5
    %v1593 = vperm.slane %v1297, 5
    %v1610 = vunpack.c.l.b16 %v1576
    %v1611 = vunpack.c.h.b16 %v1576
    %v1612 = vunpack.c.l.b16 %v1577
    %v1613 = vunpack.c.h.b16 %v1577
    %v1614 = vunpack.c.l.b16 %v1578
    %v1615 = vunpack.c.h.b16 %v1578
    %v1616 = vunpack.c.l.b16 %v1579
    %v1617 = vunpack.c.h.b16 %v1579
    %v1618 = vunpack.c.l.b16 %v1580
    %v1619 = vunpack.c.h.b16 %v1580
    %v1620 = vunpack.c.l.b16 %v1581
    %v1621 = vunpack.c.h.b16 %v1581
    %v1622 = vunpack.c.l.b16 %v1582
    %v1623 = vunpack.c.h.b16 %v1582
    %v1624 = vunpack.c.l.b16 %v1583
    %v1625 = vunpack.c.h.b16 %v1583
    %v1626 = vunpack.c.l.b16 %v1584
    %v1627 = vunpack.c.h.b16 %v1584
    %v1628 = vunpack.c.l.b16 %v1585
    %v1629 = vunpack.c.h.b16 %v1585
    %v1630 = vunpack.c.l.b16 %v1586
    %v1631 = vunpack.c.h.b16 %v1586
    %v1632 = vunpack.c.l.b16 %v1587
    %v1633 = vunpack.c.h.b16 %v1587
    %v1634 = vunpack.c.l.b16 %v1588
    %v1635 = vunpack.c.h.b16 %v1588
    %v1636 = vunpack.c.l.b16 %v1589
    %v1637 = vunpack.c.h.b16 %v1589
    %v1638 = vunpack.c.l.b16 %v1590
    %v1639 = vunpack.c.h.b16 %v1590
    %v1640 = vunpack.c.l.b16 %v1591
    %v1641 = vunpack.c.h.b16 %v1591
    %v1642 = vpack.c.b16 %v1612, %v1610
    %v1643 = vpack.c.b16 %v1613, %v1611
    %v1644 = vpack.c.b16 %v1616, %v1614
    %v1645 = vpack.c.b16 %v1617, %v1615
    %v1646 = vpack.c.b16 %v1620, %v1618
    %v1647 = vpack.c.b16 %v1621, %v1619
    %v1648 = vpack.c.b16 %v1624, %v1622
    %v1649 = vpack.c.b16 %v1625, %v1623
    %v1650 = vpack.c.b16 %v1628, %v1626
    %v1651 = vpack.c.b16 %v1629, %v1627
    %v1652 = vpack.c.b16 %v1632, %v1630
    %v1653 = vpack.c.b16 %v1633, %v1631
    %v1654 = vpack.c.b16 %v1636, %v1634
    %v1655 = vpack.c.b16 %v1637, %v1635
    %v1656 = vpack.c.b16 %v1640, %v1638
    %v1657 = vpack.c.b16 %v1641, %v1639
    %1674 = vmatpush.bf16.msra.mxu0 %v1656
    %1675 = vmatpush.bf16.msra.mxu0 %v1654
    %1676 = vmatpush.bf16.msra.mxu0 %v1652
    %1677 = vmatpush.bf16.msra.mxu0 %v1650
    %1678 = vmatpush.bf16.msra.mxu0 %v1648
    %1679 = vmatpush.bf16.msra.mxu0 %v1646
    %1680 = vmatpush.bf16.msra.mxu0 %v1644
    %1681 = vmatpush.bf16.msra.mxu0 %v1642
    %1682 = vmatmul.bf16.gmra.mxu0 %v1574
    %v1683 = vpop.f32.mrf.mxu0
    %v1684 = vadd.f32 %v1592, %v1683
    %v1685 = vpop.f32.mrf.mxu0
    %v1686 = vadd.f32 %v1592, %v1685
    %1687 = vdwg.mxu0
    %1688 = vmatpush.bf16.msra.mxu0 %v1657
    %1689 = vmatpush.bf16.msra.mxu0 %v1655
    %1690 = vmatpush.bf16.msra.mxu0 %v1653
    %1691 = vmatpush.bf16.msra.mxu0 %v1651
    %1692 = vmatpush.bf16.msra.mxu0 %v1649
    %1693 = vmatpush.bf16.msra.mxu0 %v1647
    %1694 = vmatpush.bf16.msra.mxu0 %v1645
    %1695 = vmatpush.bf16.msra.mxu0 %v1643
    %1696 = vmatmul.bf16.gmra.mxu0 %v1574
    %v1697 = vpop.f32.mrf.mxu0
    %v1698 = vadd.f32 %v1593, %v1697
    %v1699 = vpop.f32.mrf.mxu0
    %v1700 = vadd.f32 %v1593, %v1699
    %1701 = vdwg.mxu0
    %v1702 = vmax.f32 %v1684, 0.0
    %v1703 = vmax.f32 %v1698, 0.0
    %v1704 = vmax.f32 %v1686, 0.0
    %v1705 = vmax.f32 %v1700, 0.0
    %v1706 = vpack.c.bf16 %v1704, %v1702
    %v1707 = vpack.c.bf16 %v1705, %v1703
    %s1708 = scalar_lea.vmem [#allocation8], 640
    %v1709 = vld [vmem:[%s1708] sm:$0xf]
    %v1710 = vld [vmem:[%s1708 + $0x4] sm:$0xf]
    %v1711 = vld [vmem:[%s1708 + $0x8] sm:$0xf]
    %v1712 = vld [vmem:[%s1708 + $0xc] sm:$0xf]
    %v1713 = vld [vmem:[%s1708 + $0x10] sm:$0xf]
    %v1714 = vld [vmem:[%s1708 + $0x14] sm:$0xf]
    %v1715 = vld [vmem:[%s1708 + $0x18] sm:$0xf]
    %v1716 = vld [vmem:[%s1708 + $0x1c] sm:$0xf]
    %v1717 = vld [vmem:[%s1708 + $0x20] sm:$0xf]
    %v1718 = vld [vmem:[%s1708 + $0x24] sm:$0xf]
    %v1719 = vld [vmem:[%s1708 + $0x28] sm:$0xf]
    %v1720 = vld [vmem:[%s1708 + $0x2c] sm:$0xf]
    %v1721 = vld [vmem:[%s1708 + $0x30] sm:$0xf]
    %v1722 = vld [vmem:[%s1708 + $0x34] sm:$0xf]
    %v1723 = vld [vmem:[%s1708 + $0x38] sm:$0xf]
    %v1724 = vld [vmem:[%s1708 + $0x3c] sm:$0xf]
    %v1725 = vld [vmem:[%s1708 + $0x40] sm:$0xf]
    %v1726 = vld [vmem:[%s1708 + $0x44] sm:$0xf]
    %v1727 = vld [vmem:[%s1708 + $0x48] sm:$0xf]
    %v1728 = vld [vmem:[%s1708 + $0x4c] sm:$0xf]
    %v1729 = vld [vmem:[%s1708 + $0x50] sm:$0xf]
    %v1730 = vld [vmem:[%s1708 + $0x54] sm:$0xf]
    %v1731 = vld [vmem:[%s1708 + $0x58] sm:$0xf]
    %v1732 = vld [vmem:[%s1708 + $0x5c] sm:$0xf]
    %v1733 = vld [vmem:[%s1708 + $0x60] sm:$0xf]
    %v1734 = vld [vmem:[%s1708 + $0x64] sm:$0xf]
    %v1735 = vld [vmem:[%s1708 + $0x68] sm:$0xf]
    %v1736 = vld [vmem:[%s1708 + $0x6c] sm:$0xf]
    %v1737 = vld [vmem:[%s1708 + $0x70] sm:$0xf]
    %v1738 = vld [vmem:[%s1708 + $0x74] sm:$0xf]
    %v1739 = vld [vmem:[%s1708 + $0x78] sm:$0xf]
    %v1740 = vld [vmem:[%s1708 + $0x7c] sm:$0xf]
    %v1741 = vperm.slane %v1448, 5
    %v1774 = vunpack.c.l.b16 %v1709
    %v1775 = vunpack.c.l.b16 %v1710
    %v1776 = vunpack.c.l.b16 %v1711
    %v1777 = vunpack.c.l.b16 %v1712
    %v1778 = vunpack.c.l.b16 %v1713
    %v1779 = vunpack.c.l.b16 %v1714
    %v1780 = vunpack.c.l.b16 %v1715
    %v1781 = vunpack.c.l.b16 %v1716
    %v1782 = vunpack.c.l.b16 %v1717
    %v1783 = vunpack.c.l.b16 %v1718
    %v1784 = vunpack.c.l.b16 %v1719
    %v1785 = vunpack.c.l.b16 %v1720
    %v1786 = vunpack.c.l.b16 %v1721
    %v1787 = vunpack.c.l.b16 %v1722
    %v1788 = vunpack.c.l.b16 %v1723
    %v1789 = vunpack.c.l.b16 %v1724
    %v1790 = vunpack.c.l.b16 %v1725
    %v1791 = vunpack.c.l.b16 %v1726
    %v1792 = vunpack.c.l.b16 %v1727
    %v1793 = vunpack.c.l.b16 %v1728
    %v1794 = vunpack.c.l.b16 %v1729
    %v1795 = vunpack.c.l.b16 %v1730
    %v1796 = vunpack.c.l.b16 %v1731
    %v1797 = vunpack.c.l.b16 %v1732
    %v1798 = vunpack.c.l.b16 %v1733
    %v1799 = vunpack.c.l.b16 %v1734
    %v1800 = vunpack.c.l.b16 %v1735
    %v1801 = vunpack.c.l.b16 %v1736
    %v1802 = vunpack.c.l.b16 %v1737
    %v1803 = vunpack.c.l.b16 %v1738
    %v1804 = vunpack.c.l.b16 %v1739
    %v1805 = vunpack.c.l.b16 %v1740
    %v1806 = vpack.c.b16 %v1775, %v1774
    %v1807 = vpack.c.b16 %v1777, %v1776
    %v1808 = vpack.c.b16 %v1779, %v1778
    %v1809 = vpack.c.b16 %v1781, %v1780
    %v1810 = vpack.c.b16 %v1783, %v1782
    %v1811 = vpack.c.b16 %v1785, %v1784
    %v1812 = vpack.c.b16 %v1787, %v1786
    %v1813 = vpack.c.b16 %v1789, %v1788
    %v1814 = vpack.c.b16 %v1791, %v1790
    %v1815 = vpack.c.b16 %v1793, %v1792
    %v1816 = vpack.c.b16 %v1795, %v1794
    %v1817 = vpack.c.b16 %v1797, %v1796
    %v1818 = vpack.c.b16 %v1799, %v1798
    %v1819 = vpack.c.b16 %v1801, %v1800
    %v1820 = vpack.c.b16 %v1803, %v1802
    %v1821 = vpack.c.b16 %v1805, %v1804
    %1838 = vmatpush.bf16.msra.mxu0 %v1813
    %1839 = vmatpush.bf16.msra.mxu0 %v1812
    %1840 = vmatpush.bf16.msra.mxu0 %v1811
    %1841 = vmatpush.bf16.msra.mxu0 %v1810
    %1842 = vmatpush.bf16.msra.mxu0 %v1809
    %1843 = vmatpush.bf16.msra.mxu0 %v1808
    %1844 = vmatpush.bf16.msra.mxu0 %v1807
    %1845 = vmatpush.bf16.msra.mxu0 %v1806
    %1846 = vmatmul.bf16.gmra.mxu0 %v1706
    %v1847 = vpop.f32.mrf.mxu0
    %v1848 = vadd.f32 %v1741, %v1847
    %v1849 = vpop.f32.mrf.mxu0
    %v1850 = vadd.f32 %v1741, %v1849
    %1851 = vdwg.mxu0
    %1852 = vmatpush.bf16.msra.mxu0 %v1821
    %1853 = vmatpush.bf16.msra.mxu0 %v1820
    %1854 = vmatpush.bf16.msra.mxu0 %v1819
    %1855 = vmatpush.bf16.msra.mxu0 %v1818
    %1856 = vmatpush.bf16.msra.mxu0 %v1817
    %1857 = vmatpush.bf16.msra.mxu0 %v1816
    %1858 = vmatpush.bf16.msra.mxu0 %v1815
    %1859 = vmatpush.bf16.msra.mxu0 %v1814
    %1860 = vmatmul.bf16.gmra.mxu0 %v1707
    %v1861 = vpop.f32.mrf.mxu0
    %v1862 = vadd.f32 %v1848, %v1861
    %v1863 = vpop.f32.mrf.mxu0
    %v1864 = vadd.f32 %v1850, %v1863
    %1865 = vdwg.mxu0
    %v1866 = vpack.c.bf16 %v1864, %v1862
    %s1867 = scalar_lea.vmem [#allocation5], 768
    %v1868 = vld [vmem:[%s1867] sm:$0xff]
    %v1869 = vld [vmem:[%s1867 + $0x8] sm:$0xff]
    %v1870 = vld [vmem:[%s1867 + $0x10] sm:$0xff]
    %v1871 = vld [vmem:[%s1867 + $0x18] sm:$0xff]
    %v1872 = vld [vmem:[%s1867 + $0x20] sm:$0xff]
    %v1873 = vld [vmem:[%s1867 + $0x28] sm:$0xff]
    %v1874 = vld [vmem:[%s1867 + $0x30] sm:$0xff]
    %v1875 = vld [vmem:[%s1867 + $0x38] sm:$0xff]
    %v1876 = vld [vmem:[%s1867 + $0x40] sm:$0xff]
    %v1877 = vld [vmem:[%s1867 + $0x48] sm:$0xff]
    %v1878 = vld [vmem:[%s1867 + $0x50] sm:$0xff]
    %v1879 = vld [vmem:[%s1867 + $0x58] sm:$0xff]
    %v1880 = vld [vmem:[%s1867 + $0x60] sm:$0xff]
    %v1881 = vld [vmem:[%s1867 + $0x68] sm:$0xff]
    %v1882 = vld [vmem:[%s1867 + $0x70] sm:$0xff]
    %v1883 = vld [vmem:[%s1867 + $0x78] sm:$0xff]
    %v1884 = vld [vmem:[#allocation7] sm:$0x88]
    %v1885 = vunpack.c.l.bf16 %v1884
    %v1886 = vunpack.c.h.bf16 %v1884
    %v1887 = vperm.slane %v1885, 6
    %v1888 = vperm.slane %v1886, 6
    %v1905 = vunpack.c.l.b16 %v1868
    %v1906 = vunpack.c.h.b16 %v1868
    %v1907 = vunpack.c.l.b16 %v1869
    %v1908 = vunpack.c.h.b16 %v1869
    %v1909 = vunpack.c.l.b16 %v1870
    %v1910 = vunpack.c.h.b16 %v1870
    %v1911 = vunpack.c.l.b16 %v1871
    %v1912 = vunpack.c.h.b16 %v1871
    %v1913 = vunpack.c.l.b16 %v1872
    %v1914 = vunpack.c.h.b16 %v1872
    %v1915 = vunpack.c.l.b16 %v1873
    %v1916 = vunpack.c.h.b16 %v1873
    %v1917 = vunpack.c.l.b16 %v1874
    %v1918 = vunpack.c.h.b16 %v1874
    %v1919 = vunpack.c.l.b16 %v1875
    %v1920 = vunpack.c.h.b16 %v1875
    %v1921 = vunpack.c.l.b16 %v1876
    %v1922 = vunpack.c.h.b16 %v1876
    %v1923 = vunpack.c.l.b16 %v1877
    %v1924 = vunpack.c.h.b16 %v1877
    %v1925 = vunpack.c.l.b16 %v1878
    %v1926 = vunpack.c.h.b16 %v1878
    %v1927 = vunpack.c.l.b16 %v1879
    %v1928 = vunpack.c.h.b16 %v1879
    %v1929 = vunpack.c.l.b16 %v1880
    %v1930 = vunpack.c.h.b16 %v1880
    %v1931 = vunpack.c.l.b16 %v1881
    %v1932 = vunpack.c.h.b16 %v1881
    %v1933 = vunpack.c.l.b16 %v1882
    %v1934 = vunpack.c.h.b16 %v1882
    %v1935 = vunpack.c.l.b16 %v1883
    %v1936 = vunpack.c.h.b16 %v1883
    %v1937 = vpack.c.b16 %v1907, %v1905
    %v1938 = vpack.c.b16 %v1908, %v1906
    %v1939 = vpack.c.b16 %v1911, %v1909
    %v1940 = vpack.c.b16 %v1912, %v1910
    %v1941 = vpack.c.b16 %v1915, %v1913
    %v1942 = vpack.c.b16 %v1916, %v1914
    %v1943 = vpack.c.b16 %v1919, %v1917
    %v1944 = vpack.c.b16 %v1920, %v1918
    %v1945 = vpack.c.b16 %v1923, %v1921
    %v1946 = vpack.c.b16 %v1924, %v1922
    %v1947 = vpack.c.b16 %v1927, %v1925
    %v1948 = vpack.c.b16 %v1928, %v1926
    %v1949 = vpack.c.b16 %v1931, %v1929
    %v1950 = vpack.c.b16 %v1932, %v1930
    %v1951 = vpack.c.b16 %v1935, %v1933
    %v1952 = vpack.c.b16 %v1936, %v1934
    %1969 = vmatpush.bf16.msra.mxu0 %v1951
    %1970 = vmatpush.bf16.msra.mxu0 %v1949
    %1971 = vmatpush.bf16.msra.mxu0 %v1947
    %1972 = vmatpush.bf16.msra.mxu0 %v1945
    %1973 = vmatpush.bf16.msra.mxu0 %v1943
    %1974 = vmatpush.bf16.msra.mxu0 %v1941
    %1975 = vmatpush.bf16.msra.mxu0 %v1939
    %1976 = vmatpush.bf16.msra.mxu0 %v1937
    %1977 = vmatmul.bf16.gmra.mxu0 %v1866
    %v1978 = vpop.f32.mrf.mxu0
    %v1979 = vadd.f32 %v1887, %v1978
    %v1980 = vpop.f32.mrf.mxu0
    %v1981 = vadd.f32 %v1887, %v1980
    %1982 = vdwg.mxu0
    %1983 = vmatpush.bf16.msra.mxu0 %v1952
    %1984 = vmatpush.bf16.msra.mxu0 %v1950
    %1985 = vmatpush.bf16.msra.mxu0 %v1948
    %1986 = vmatpush.bf16.msra.mxu0 %v1946
    %1987 = vmatpush.bf16.msra.mxu0 %v1944
    %1988 = vmatpush.bf16.msra.mxu0 %v1942
    %1989 = vmatpush.bf16.msra.mxu0 %v1940
    %1990 = vmatpush.bf16.msra.mxu0 %v1938
    %1991 = vmatmul.bf16.gmra.mxu0 %v1866
    %v1992 = vpop.f32.mrf.mxu0
    %v1993 = vadd.f32 %v1888, %v1992
    %v1994 = vpop.f32.mrf.mxu0
    %v1995 = vadd.f32 %v1888, %v1994
    %1996 = vdwg.mxu0
    %v1997 = vmax.f32 %v1979, 0.0
    %v1998 = vmax.f32 %v1993, 0.0
    %v1999 = vmax.f32 %v1981, 0.0
    %v2000 = vmax.f32 %v1995, 0.0
    %v2001 = vpack.c.bf16 %v1999, %v1997
    %v2002 = vpack.c.bf16 %v2000, %v1998
    %s2003 = scalar_lea.vmem [#allocation8], 768
    %v2004 = vld [vmem:[%s2003] sm:$0xf]
    %v2005 = vld [vmem:[%s2003 + $0x4] sm:$0xf]
    %v2006 = vld [vmem:[%s2003 + $0x8] sm:$0xf]
    %v2007 = vld [vmem:[%s2003 + $0xc] sm:$0xf]
    %v2008 = vld [vmem:[%s2003 + $0x10] sm:$0xf]
    %v2009 = vld [vmem:[%s2003 + $0x14] sm:$0xf]
    %v2010 = vld [vmem:[%s2003 + $0x18] sm:$0xf]
    %v2011 = vld [vmem:[%s2003 + $0x1c] sm:$0xf]
    %v2012 = vld [vmem:[%s2003 + $0x20] sm:$0xf]
    %v2013 = vld [vmem:[%s2003 + $0x24] sm:$0xf]
    %v2014 = vld [vmem:[%s2003 + $0x28] sm:$0xf]
    %v2015 = vld [vmem:[%s2003 + $0x2c] sm:$0xf]
    %v2016 = vld [vmem:[%s2003 + $0x30] sm:$0xf]
    %v2017 = vld [vmem:[%s2003 + $0x34] sm:$0xf]
    %v2018 = vld [vmem:[%s2003 + $0x38] sm:$0xf]
    %v2019 = vld [vmem:[%s2003 + $0x3c] sm:$0xf]
    %v2020 = vld [vmem:[%s2003 + $0x40] sm:$0xf]
    %v2021 = vld [vmem:[%s2003 + $0x44] sm:$0xf]
    %v2022 = vld [vmem:[%s2003 + $0x48] sm:$0xf]
    %v2023 = vld [vmem:[%s2003 + $0x4c] sm:$0xf]
    %v2024 = vld [vmem:[%s2003 + $0x50] sm:$0xf]
    %v2025 = vld [vmem:[%s2003 + $0x54] sm:$0xf]
    %v2026 = vld [vmem:[%s2003 + $0x58] sm:$0xf]
    %v2027 = vld [vmem:[%s2003 + $0x5c] sm:$0xf]
    %v2028 = vld [vmem:[%s2003 + $0x60] sm:$0xf]
    %v2029 = vld [vmem:[%s2003 + $0x64] sm:$0xf]
    %v2030 = vld [vmem:[%s2003 + $0x68] sm:$0xf]
    %v2031 = vld [vmem:[%s2003 + $0x6c] sm:$0xf]
    %v2032 = vld [vmem:[%s2003 + $0x70] sm:$0xf]
    %v2033 = vld [vmem:[%s2003 + $0x74] sm:$0xf]
    %v2034 = vld [vmem:[%s2003 + $0x78] sm:$0xf]
    %v2035 = vld [vmem:[%s2003 + $0x7c] sm:$0xf]
    %v2036 = vld [vmem:[#allocation10] sm:$0x8]
    %v2037 = vunpack.c.l.bf16 %v2036
    %v2038 = vperm.slane %v2037, 6
    %v2071 = vunpack.c.l.b16 %v2004
    %v2072 = vunpack.c.l.b16 %v2005
    %v2073 = vunpack.c.l.b16 %v2006
    %v2074 = vunpack.c.l.b16 %v2007
    %v2075 = vunpack.c.l.b16 %v2008
    %v2076 = vunpack.c.l.b16 %v2009
    %v2077 = vunpack.c.l.b16 %v2010
    %v2078 = vunpack.c.l.b16 %v2011
    %v2079 = vunpack.c.l.b16 %v2012
    %v2080 = vunpack.c.l.b16 %v2013
    %v2081 = vunpack.c.l.b16 %v2014
    %v2082 = vunpack.c.l.b16 %v2015
    %v2083 = vunpack.c.l.b16 %v2016
    %v2084 = vunpack.c.l.b16 %v2017
    %v2085 = vunpack.c.l.b16 %v2018
    %v2086 = vunpack.c.l.b16 %v2019
    %v2087 = vunpack.c.l.b16 %v2020
    %v2088 = vunpack.c.l.b16 %v2021
    %v2089 = vunpack.c.l.b16 %v2022
    %v2090 = vunpack.c.l.b16 %v2023
    %v2091 = vunpack.c.l.b16 %v2024
    %v2092 = vunpack.c.l.b16 %v2025
    %v2093 = vunpack.c.l.b16 %v2026
    %v2094 = vunpack.c.l.b16 %v2027
    %v2095 = vunpack.c.l.b16 %v2028
    %v2096 = vunpack.c.l.b16 %v2029
    %v2097 = vunpack.c.l.b16 %v2030
    %v2098 = vunpack.c.l.b16 %v2031
    %v2099 = vunpack.c.l.b16 %v2032
    %v2100 = vunpack.c.l.b16 %v2033
    %v2101 = vunpack.c.l.b16 %v2034
    %v2102 = vunpack.c.l.b16 %v2035
    %v2103 = vpack.c.b16 %v2072, %v2071
    %v2104 = vpack.c.b16 %v2074, %v2073
    %v2105 = vpack.c.b16 %v2076, %v2075
    %v2106 = vpack.c.b16 %v2078, %v2077
    %v2107 = vpack.c.b16 %v2080, %v2079
    %v2108 = vpack.c.b16 %v2082, %v2081
    %v2109 = vpack.c.b16 %v2084, %v2083
    %v2110 = vpack.c.b16 %v2086, %v2085
    %v2111 = vpack.c.b16 %v2088, %v2087
    %v2112 = vpack.c.b16 %v2090, %v2089
    %v2113 = vpack.c.b16 %v2092, %v2091
    %v2114 = vpack.c.b16 %v2094, %v2093
    %v2115 = vpack.c.b16 %v2096, %v2095
    %v2116 = vpack.c.b16 %v2098, %v2097
    %v2117 = vpack.c.b16 %v2100, %v2099
    %v2118 = vpack.c.b16 %v2102, %v2101
    %2135 = vmatpush.bf16.msra.mxu0 %v2110
    %2136 = vmatpush.bf16.msra.mxu0 %v2109
    %2137 = vmatpush.bf16.msra.mxu0 %v2108
    %2138 = vmatpush.bf16.msra.mxu0 %v2107
    %2139 = vmatpush.bf16.msra.mxu0 %v2106
    %2140 = vmatpush.bf16.msra.mxu0 %v2105
    %2141 = vmatpush.bf16.msra.mxu0 %v2104
    %2142 = vmatpush.bf16.msra.mxu0 %v2103
    %2143 = vmatmul.bf16.gmra.mxu0 %v2001
    %v2144 = vpop.f32.mrf.mxu0
    %v2145 = vadd.f32 %v2038, %v2144
    %v2146 = vpop.f32.mrf.mxu0
    %v2147 = vadd.f32 %v2038, %v2146
    %2148 = vdwg.mxu0
    %2149 = vmatpush.bf16.msra.mxu0 %v2118
    %2150 = vmatpush.bf16.msra.mxu0 %v2117
    %2151 = vmatpush.bf16.msra.mxu0 %v2116
    %2152 = vmatpush.bf16.msra.mxu0 %v2115
    %2153 = vmatpush.bf16.msra.mxu0 %v2114
    %2154 = vmatpush.bf16.msra.mxu0 %v2113
    %2155 = vmatpush.bf16.msra.mxu0 %v2112
    %2156 = vmatpush.bf16.msra.mxu0 %v2111
    %2157 = vmatmul.bf16.gmra.mxu0 %v2002
    %v2158 = vpop.f32.mrf.mxu0
    %v2159 = vadd.f32 %v2145, %v2158
    %v2160 = vpop.f32.mrf.mxu0
    %v2161 = vadd.f32 %v2147, %v2160
    %2162 = vdwg.mxu0
    %v2163 = vpack.c.bf16 %v2161, %v2159
    %s2164 = scalar_lea.vmem [#allocation5], 896
    %v2165 = vld [vmem:[%s2164] sm:$0xff]
    %v2166 = vld [vmem:[%s2164 + $0x8] sm:$0xff]
    %v2167 = vld [vmem:[%s2164 + $0x10] sm:$0xff]
    %v2168 = vld [vmem:[%s2164 + $0x18] sm:$0xff]
    %v2169 = vld [vmem:[%s2164 + $0x20] sm:$0xff]
    %v2170 = vld [vmem:[%s2164 + $0x28] sm:$0xff]
    %v2171 = vld [vmem:[%s2164 + $0x30] sm:$0xff]
    %v2172 = vld [vmem:[%s2164 + $0x38] sm:$0xff]
    %v2173 = vld [vmem:[%s2164 + $0x40] sm:$0xff]
    %v2174 = vld [vmem:[%s2164 + $0x48] sm:$0xff]
    %v2175 = vld [vmem:[%s2164 + $0x50] sm:$0xff]
    %v2176 = vld [vmem:[%s2164 + $0x58] sm:$0xff]
    %v2177 = vld [vmem:[%s2164 + $0x60] sm:$0xff]
    %v2178 = vld [vmem:[%s2164 + $0x68] sm:$0xff]
    %v2179 = vld [vmem:[%s2164 + $0x70] sm:$0xff]
    %v2180 = vld [vmem:[%s2164 + $0x78] sm:$0xff]
    %v2181 = vperm.slane %v1885, 7
    %v2182 = vperm.slane %v1886, 7
    %v2199 = vunpack.c.l.b16 %v2165
    %v2200 = vunpack.c.h.b16 %v2165
    %v2201 = vunpack.c.l.b16 %v2166
    %v2202 = vunpack.c.h.b16 %v2166
    %v2203 = vunpack.c.l.b16 %v2167
    %v2204 = vunpack.c.h.b16 %v2167
    %v2205 = vunpack.c.l.b16 %v2168
    %v2206 = vunpack.c.h.b16 %v2168
    %v2207 = vunpack.c.l.b16 %v2169
    %v2208 = vunpack.c.h.b16 %v2169
    %v2209 = vunpack.c.l.b16 %v2170
    %v2210 = vunpack.c.h.b16 %v2170
    %v2211 = vunpack.c.l.b16 %v2171
    %v2212 = vunpack.c.h.b16 %v2171
    %v2213 = vunpack.c.l.b16 %v2172
    %v2214 = vunpack.c.h.b16 %v2172
    %v2215 = vunpack.c.l.b16 %v2173
    %v2216 = vunpack.c.h.b16 %v2173
    %v2217 = vunpack.c.l.b16 %v2174
    %v2218 = vunpack.c.h.b16 %v2174
    %v2219 = vunpack.c.l.b16 %v2175
    %v2220 = vunpack.c.h.b16 %v2175
    %v2221 = vunpack.c.l.b16 %v2176
    %v2222 = vunpack.c.h.b16 %v2176
    %v2223 = vunpack.c.l.b16 %v2177
    %v2224 = vunpack.c.h.b16 %v2177
    %v2225 = vunpack.c.l.b16 %v2178
    %v2226 = vunpack.c.h.b16 %v2178
    %v2227 = vunpack.c.l.b16 %v2179
    %v2228 = vunpack.c.h.b16 %v2179
    %v2229 = vunpack.c.l.b16 %v2180
    %v2230 = vunpack.c.h.b16 %v2180
    %v2231 = vpack.c.b16 %v2201, %v2199
    %v2232 = vpack.c.b16 %v2202, %v2200
    %v2233 = vpack.c.b16 %v2205, %v2203
    %v2234 = vpack.c.b16 %v2206, %v2204
    %v2235 = vpack.c.b16 %v2209, %v2207
    %v2236 = vpack.c.b16 %v2210, %v2208
    %v2237 = vpack.c.b16 %v2213, %v2211
    %v2238 = vpack.c.b16 %v2214, %v2212
    %v2239 = vpack.c.b16 %v2217, %v2215
    %v2240 = vpack.c.b16 %v2218, %v2216
    %v2241 = vpack.c.b16 %v2221, %v2219
    %v2242 = vpack.c.b16 %v2222, %v2220
    %v2243 = vpack.c.b16 %v2225, %v2223
    %v2244 = vpack.c.b16 %v2226, %v2224
    %v2245 = vpack.c.b16 %v2229, %v2227
    %v2246 = vpack.c.b16 %v2230, %v2228
    %2263 = vmatpush.bf16.msra.mxu0 %v2245
    %2264 = vmatpush.bf16.msra.mxu0 %v2243
    %2265 = vmatpush.bf16.msra.mxu0 %v2241
    %2266 = vmatpush.bf16.msra.mxu0 %v2239
    %2267 = vmatpush.bf16.msra.mxu0 %v2237
    %2268 = vmatpush.bf16.msra.mxu0 %v2235
    %2269 = vmatpush.bf16.msra.mxu0 %v2233
    %2270 = vmatpush.bf16.msra.mxu0 %v2231
    %2271 = vmatmul.bf16.gmra.mxu0 %v2163
    %v2272 = vpop.f32.mrf.mxu0
    %v2273 = vadd.f32 %v2181, %v2272
    %v2274 = vpop.f32.mrf.mxu0
    %v2275 = vadd.f32 %v2181, %v2274
    %2276 = vdwg.mxu0
    %2277 = vmatpush.bf16.msra.mxu0 %v2246
    %2278 = vmatpush.bf16.msra.mxu0 %v2244
    %2279 = vmatpush.bf16.msra.mxu0 %v2242
    %2280 = vmatpush.bf16.msra.mxu0 %v2240
    %2281 = vmatpush.bf16.msra.mxu0 %v2238
    %2282 = vmatpush.bf16.msra.mxu0 %v2236
    %2283 = vmatpush.bf16.msra.mxu0 %v2234
    %2284 = vmatpush.bf16.msra.mxu0 %v2232
    %2285 = vmatmul.bf16.gmra.mxu0 %v2163
    %v2286 = vpop.f32.mrf.mxu0
    %v2287 = vadd.f32 %v2182, %v2286
    %v2288 = vpop.f32.mrf.mxu0
    %v2289 = vadd.f32 %v2182, %v2288
    %2290 = vdwg.mxu0
    %v2291 = vmax.f32 %v2273, 0.0
    %v2292 = vmax.f32 %v2287, 0.0
    %v2293 = vmax.f32 %v2275, 0.0
    %v2294 = vmax.f32 %v2289, 0.0
    %v2295 = vpack.c.bf16 %v2293, %v2291
    %v2296 = vpack.c.bf16 %v2294, %v2292
    %s2297 = scalar_lea.vmem [#allocation8], 896
    %v2298 = vld [vmem:[%s2297] sm:$0xf]
    %v2299 = vld [vmem:[%s2297 + $0x4] sm:$0xf]
    %v2300 = vld [vmem:[%s2297 + $0x8] sm:$0xf]
    %v2301 = vld [vmem:[%s2297 + $0xc] sm:$0xf]
    %v2302 = vld [vmem:[%s2297 + $0x10] sm:$0xf]
    %v2303 = vld [vmem:[%s2297 + $0x14] sm:$0xf]
    %v2304 = vld [vmem:[%s2297 + $0x18] sm:$0xf]
    %v2305 = vld [vmem:[%s2297 + $0x1c] sm:$0xf]
    %v2306 = vld [vmem:[%s2297 + $0x20] sm:$0xf]
    %v2307 = vld [vmem:[%s2297 + $0x24] sm:$0xf]
    %v2308 = vld [vmem:[%s2297 + $0x28] sm:$0xf]
    %v2309 = vld [vmem:[%s2297 + $0x2c] sm:$0xf]
    %v2310 = vld [vmem:[%s2297 + $0x30] sm:$0xf]
    %v2311 = vld [vmem:[%s2297 + $0x34] sm:$0xf]
    %v2312 = vld [vmem:[%s2297 + $0x38] sm:$0xf]
    %v2313 = vld [vmem:[%s2297 + $0x3c] sm:$0xf]
    %v2314 = vld [vmem:[%s2297 + $0x40] sm:$0xf]
    %v2315 = vld [vmem:[%s2297 + $0x44] sm:$0xf]
    %v2316 = vld [vmem:[%s2297 + $0x48] sm:$0xf]
    %v2317 = vld [vmem:[%s2297 + $0x4c] sm:$0xf]
    %v2318 = vld [vmem:[%s2297 + $0x50] sm:$0xf]
    %v2319 = vld [vmem:[%s2297 + $0x54] sm:$0xf]
    %v2320 = vld [vmem:[%s2297 + $0x58] sm:$0xf]
    %v2321 = vld [vmem:[%s2297 + $0x5c] sm:$0xf]
    %v2322 = vld [vmem:[%s2297 + $0x60] sm:$0xf]
    %v2323 = vld [vmem:[%s2297 + $0x64] sm:$0xf]
    %v2324 = vld [vmem:[%s2297 + $0x68] sm:$0xf]
    %v2325 = vld [vmem:[%s2297 + $0x6c] sm:$0xf]
    %v2326 = vld [vmem:[%s2297 + $0x70] sm:$0xf]
    %v2327 = vld [vmem:[%s2297 + $0x74] sm:$0xf]
    %v2328 = vld [vmem:[%s2297 + $0x78] sm:$0xf]
    %v2329 = vld [vmem:[%s2297 + $0x7c] sm:$0xf]
    %v2330 = vperm.slane %v2037, 7
    %v2363 = vunpack.c.l.b16 %v2298
    %v2364 = vunpack.c.l.b16 %v2299
    %v2365 = vunpack.c.l.b16 %v2300
    %v2366 = vunpack.c.l.b16 %v2301
    %v2367 = vunpack.c.l.b16 %v2302
    %v2368 = vunpack.c.l.b16 %v2303
    %v2369 = vunpack.c.l.b16 %v2304
    %v2370 = vunpack.c.l.b16 %v2305
    %v2371 = vunpack.c.l.b16 %v2306
    %v2372 = vunpack.c.l.b16 %v2307
    %v2373 = vunpack.c.l.b16 %v2308
    %v2374 = vunpack.c.l.b16 %v2309
    %v2375 = vunpack.c.l.b16 %v2310
    %v2376 = vunpack.c.l.b16 %v2311
    %v2377 = vunpack.c.l.b16 %v2312
    %v2378 = vunpack.c.l.b16 %v2313
    %v2379 = vunpack.c.l.b16 %v2314
    %v2380 = vunpack.c.l.b16 %v2315
    %v2381 = vunpack.c.l.b16 %v2316
    %v2382 = vunpack.c.l.b16 %v2317
    %v2383 = vunpack.c.l.b16 %v2318
    %v2384 = vunpack.c.l.b16 %v2319
    %v2385 = vunpack.c.l.b16 %v2320
    %v2386 = vunpack.c.l.b16 %v2321
    %v2387 = vunpack.c.l.b16 %v2322
    %v2388 = vunpack.c.l.b16 %v2323
    %v2389 = vunpack.c.l.b16 %v2324
    %v2390 = vunpack.c.l.b16 %v2325
    %v2391 = vunpack.c.l.b16 %v2326
    %v2392 = vunpack.c.l.b16 %v2327
    %v2393 = vunpack.c.l.b16 %v2328
    %v2394 = vunpack.c.l.b16 %v2329
    %v2395 = vpack.c.b16 %v2364, %v2363
    %v2396 = vpack.c.b16 %v2366, %v2365
    %v2397 = vpack.c.b16 %v2368, %v2367
    %v2398 = vpack.c.b16 %v2370, %v2369
    %v2399 = vpack.c.b16 %v2372, %v2371
    %v2400 = vpack.c.b16 %v2374, %v2373
    %v2401 = vpack.c.b16 %v2376, %v2375
    %v2402 = vpack.c.b16 %v2378, %v2377
    %v2403 = vpack.c.b16 %v2380, %v2379
    %v2404 = vpack.c.b16 %v2382, %v2381
    %v2405 = vpack.c.b16 %v2384, %v2383
    %v2406 = vpack.c.b16 %v2386, %v2385
    %v2407 = vpack.c.b16 %v2388, %v2387
    %v2408 = vpack.c.b16 %v2390, %v2389
    %v2409 = vpack.c.b16 %v2392, %v2391
    %v2410 = vpack.c.b16 %v2394, %v2393
    %2427 = vmatpush.bf16.msra.mxu0 %v2402
    %2428 = vmatpush.bf16.msra.mxu0 %v2401
    %2429 = vmatpush.bf16.msra.mxu0 %v2400
    %2430 = vmatpush.bf16.msra.mxu0 %v2399
    %2431 = vmatpush.bf16.msra.mxu0 %v2398
    %2432 = vmatpush.bf16.msra.mxu0 %v2397
    %2433 = vmatpush.bf16.msra.mxu0 %v2396
    %2434 = vmatpush.bf16.msra.mxu0 %v2395
    %2435 = vmatmul.bf16.gmra.mxu0 %v2295
    %v2436 = vpop.f32.mrf.mxu0
    %v2437 = vadd.f32 %v2330, %v2436
    %v2438 = vpop.f32.mrf.mxu0
    %v2439 = vadd.f32 %v2330, %v2438
    %2440 = vdwg.mxu0
    %2441 = vmatpush.bf16.msra.mxu0 %v2410
    %2442 = vmatpush.bf16.msra.mxu0 %v2409
    %2443 = vmatpush.bf16.msra.mxu0 %v2408
    %2444 = vmatpush.bf16.msra.mxu0 %v2407
    %2445 = vmatpush.bf16.msra.mxu0 %v2406
    %2446 = vmatpush.bf16.msra.mxu0 %v2405
    %2447 = vmatpush.bf16.msra.mxu0 %v2404
    %2448 = vmatpush.bf16.msra.mxu0 %v2403
    %2449 = vmatmul.bf16.gmra.mxu0 %v2296
    %v2450 = vpop.f32.mrf.mxu0
    %v2451 = vadd.f32 %v2437, %v2450
    %v2452 = vpop.f32.mrf.mxu0
    %v2453 = vadd.f32 %v2439, %v2452
    %2454 = vdwg.mxu0
    %v2455 = vpack.c.bf16 %v2453, %v2451
    %s2456 = scalar_lea.vmem [#allocation5], 1024
    %v2457 = vld [vmem:[%s2456] sm:$0xff]
    %v2458 = vld [vmem:[%s2456 + $0x8] sm:$0xff]
    %v2459 = vld [vmem:[%s2456 + $0x10] sm:$0xff]
    %v2460 = vld [vmem:[%s2456 + $0x18] sm:$0xff]
    %v2461 = vld [vmem:[%s2456 + $0x20] sm:$0xff]
    %v2462 = vld [vmem:[%s2456 + $0x28] sm:$0xff]
    %v2463 = vld [vmem:[%s2456 + $0x30] sm:$0xff]
    %v2464 = vld [vmem:[%s2456 + $0x38] sm:$0xff]
    %v2465 = vld [vmem:[%s2456 + $0x40] sm:$0xff]
    %v2466 = vld [vmem:[%s2456 + $0x48] sm:$0xff]
    %v2467 = vld [vmem:[%s2456 + $0x50] sm:$0xff]
    %v2468 = vld [vmem:[%s2456 + $0x58] sm:$0xff]
    %v2469 = vld [vmem:[%s2456 + $0x60] sm:$0xff]
    %v2470 = vld [vmem:[%s2456 + $0x68] sm:$0xff]
    %v2471 = vld [vmem:[%s2456 + $0x70] sm:$0xff]
    %v2472 = vld [vmem:[%s2456 + $0x78] sm:$0xff]
    %v2473 = vld [vmem:[#allocation7 + $0x8] sm:$0x11]
    %v2474 = vunpack.c.l.bf16 %v2473
    %v2475 = vunpack.c.h.bf16 %v2473
    %v2476 = vperm.slane %v2474, 0
    %v2477 = vperm.slane %v2475, 0
    %v2494 = vunpack.c.l.b16 %v2457
    %v2495 = vunpack.c.h.b16 %v2457
    %v2496 = vunpack.c.l.b16 %v2458
    %v2497 = vunpack.c.h.b16 %v2458
    %v2498 = vunpack.c.l.b16 %v2459
    %v2499 = vunpack.c.h.b16 %v2459
    %v2500 = vunpack.c.l.b16 %v2460
    %v2501 = vunpack.c.h.b16 %v2460
    %v2502 = vunpack.c.l.b16 %v2461
    %v2503 = vunpack.c.h.b16 %v2461
    %v2504 = vunpack.c.l.b16 %v2462
    %v2505 = vunpack.c.h.b16 %v2462
    %v2506 = vunpack.c.l.b16 %v2463
    %v2507 = vunpack.c.h.b16 %v2463
    %v2508 = vunpack.c.l.b16 %v2464
    %v2509 = vunpack.c.h.b16 %v2464
    %v2510 = vunpack.c.l.b16 %v2465
    %v2511 = vunpack.c.h.b16 %v2465
    %v2512 = vunpack.c.l.b16 %v2466
    %v2513 = vunpack.c.h.b16 %v2466
    %v2514 = vunpack.c.l.b16 %v2467
    %v2515 = vunpack.c.h.b16 %v2467
    %v2516 = vunpack.c.l.b16 %v2468
    %v2517 = vunpack.c.h.b16 %v2468
    %v2518 = vunpack.c.l.b16 %v2469
    %v2519 = vunpack.c.h.b16 %v2469
    %v2520 = vunpack.c.l.b16 %v2470
    %v2521 = vunpack.c.h.b16 %v2470
    %v2522 = vunpack.c.l.b16 %v2471
    %v2523 = vunpack.c.h.b16 %v2471
    %v2524 = vunpack.c.l.b16 %v2472
    %v2525 = vunpack.c.h.b16 %v2472
    %v2526 = vpack.c.b16 %v2496, %v2494
    %v2527 = vpack.c.b16 %v2497, %v2495
    %v2528 = vpack.c.b16 %v2500, %v2498
    %v2529 = vpack.c.b16 %v2501, %v2499
    %v2530 = vpack.c.b16 %v2504, %v2502
    %v2531 = vpack.c.b16 %v2505, %v2503
    %v2532 = vpack.c.b16 %v2508, %v2506
    %v2533 = vpack.c.b16 %v2509, %v2507
    %v2534 = vpack.c.b16 %v2512, %v2510
    %v2535 = vpack.c.b16 %v2513, %v2511
    %v2536 = vpack.c.b16 %v2516, %v2514
    %v2537 = vpack.c.b16 %v2517, %v2515
    %v2538 = vpack.c.b16 %v2520, %v2518
    %v2539 = vpack.c.b16 %v2521, %v2519
    %v2540 = vpack.c.b16 %v2524, %v2522
    %v2541 = vpack.c.b16 %v2525, %v2523
    %2558 = vmatpush.bf16.msra.mxu0 %v2540
    %2559 = vmatpush.bf16.msra.mxu0 %v2538
    %2560 = vmatpush.bf16.msra.mxu0 %v2536
    %2561 = vmatpush.bf16.msra.mxu0 %v2534
    %2562 = vmatpush.bf16.msra.mxu0 %v2532
    %2563 = vmatpush.bf16.msra.mxu0 %v2530
    %2564 = vmatpush.bf16.msra.mxu0 %v2528
    %2565 = vmatpush.bf16.msra.mxu0 %v2526
    %2566 = vmatmul.bf16.gmra.mxu0 %v2455
    %v2567 = vpop.f32.mrf.mxu0
    %v2568 = vadd.f32 %v2476, %v2567
    %v2569 = vpop.f32.mrf.mxu0
    %v2570 = vadd.f32 %v2476, %v2569
    %2571 = vdwg.mxu0
    %2572 = vmatpush.bf16.msra.mxu0 %v2541
    %2573 = vmatpush.bf16.msra.mxu0 %v2539
    %2574 = vmatpush.bf16.msra.mxu0 %v2537
    %2575 = vmatpush.bf16.msra.mxu0 %v2535
    %2576 = vmatpush.bf16.msra.mxu0 %v2533
    %2577 = vmatpush.bf16.msra.mxu0 %v2531
    %2578 = vmatpush.bf16.msra.mxu0 %v2529
    %2579 = vmatpush.bf16.msra.mxu0 %v2527
    %2580 = vmatmul.bf16.gmra.mxu0 %v2455
    %v2581 = vpop.f32.mrf.mxu0
    %v2582 = vadd.f32 %v2477, %v2581
    %v2583 = vpop.f32.mrf.mxu0
    %v2584 = vadd.f32 %v2477, %v2583
    %2585 = vdwg.mxu0
    %v2586 = vmax.f32 %v2568, 0.0
    %v2587 = vmax.f32 %v2582, 0.0
    %v2588 = vmax.f32 %v2570, 0.0
    %v2589 = vmax.f32 %v2584, 0.0
    %v2590 = vpack.c.bf16 %v2588, %v2586
    %v2591 = vpack.c.bf16 %v2589, %v2587
    %s2592 = scalar_lea.vmem [#allocation8], 1024
    %v2593 = vld [vmem:[%s2592] sm:$0xf]
    %v2594 = vld [vmem:[%s2592 + $0x4] sm:$0xf]
    %v2595 = vld [vmem:[%s2592 + $0x8] sm:$0xf]
    %v2596 = vld [vmem:[%s2592 + $0xc] sm:$0xf]
    %v2597 = vld [vmem:[%s2592 + $0x10] sm:$0xf]
    %v2598 = vld [vmem:[%s2592 + $0x14] sm:$0xf]
    %v2599 = vld [vmem:[%s2592 + $0x18] sm:$0xf]
    %v2600 = vld [vmem:[%s2592 + $0x1c] sm:$0xf]
    %v2601 = vld [vmem:[%s2592 + $0x20] sm:$0xf]
    %v2602 = vld [vmem:[%s2592 + $0x24] sm:$0xf]
    %v2603 = vld [vmem:[%s2592 + $0x28] sm:$0xf]
    %v2604 = vld [vmem:[%s2592 + $0x2c] sm:$0xf]
    %v2605 = vld [vmem:[%s2592 + $0x30] sm:$0xf]
    %v2606 = vld [vmem:[%s2592 + $0x34] sm:$0xf]
    %v2607 = vld [vmem:[%s2592 + $0x38] sm:$0xf]
    %v2608 = vld [vmem:[%s2592 + $0x3c] sm:$0xf]
    %v2609 = vld [vmem:[%s2592 + $0x40] sm:$0xf]
    %v2610 = vld [vmem:[%s2592 + $0x44] sm:$0xf]
    %v2611 = vld [vmem:[%s2592 + $0x48] sm:$0xf]
    %v2612 = vld [vmem:[%s2592 + $0x4c] sm:$0xf]
    %v2613 = vld [vmem:[%s2592 + $0x50] sm:$0xf]
    %v2614 = vld [vmem:[%s2592 + $0x54] sm:$0xf]
    %v2615 = vld [vmem:[%s2592 + $0x58] sm:$0xf]
    %v2616 = vld [vmem:[%s2592 + $0x5c] sm:$0xf]
    %v2617 = vld [vmem:[%s2592 + $0x60] sm:$0xf]
    %v2618 = vld [vmem:[%s2592 + $0x64] sm:$0xf]
    %v2619 = vld [vmem:[%s2592 + $0x68] sm:$0xf]
    %v2620 = vld [vmem:[%s2592 + $0x6c] sm:$0xf]
    %v2621 = vld [vmem:[%s2592 + $0x70] sm:$0xf]
    %v2622 = vld [vmem:[%s2592 + $0x74] sm:$0xf]
    %v2623 = vld [vmem:[%s2592 + $0x78] sm:$0xf]
    %v2624 = vld [vmem:[%s2592 + $0x7c] sm:$0xf]
    %v2625 = vld [vmem:[#allocation10 + $0x4] sm:$0x1]
    %v2626 = vunpack.c.l.bf16 %v2625
    %v2627 = vperm.slane %v2626, 0
    %v2660 = vunpack.c.l.b16 %v2593
    %v2661 = vunpack.c.l.b16 %v2594
    %v2662 = vunpack.c.l.b16 %v2595
    %v2663 = vunpack.c.l.b16 %v2596
    %v2664 = vunpack.c.l.b16 %v2597
    %v2665 = vunpack.c.l.b16 %v2598
    %v2666 = vunpack.c.l.b16 %v2599
    %v2667 = vunpack.c.l.b16 %v2600
    %v2668 = vunpack.c.l.b16 %v2601
    %v2669 = vunpack.c.l.b16 %v2602
    %v2670 = vunpack.c.l.b16 %v2603
    %v2671 = vunpack.c.l.b16 %v2604
    %v2672 = vunpack.c.l.b16 %v2605
    %v2673 = vunpack.c.l.b16 %v2606
    %v2674 = vunpack.c.l.b16 %v2607
    %v2675 = vunpack.c.l.b16 %v2608
    %v2676 = vunpack.c.l.b16 %v2609
    %v2677 = vunpack.c.l.b16 %v2610
    %v2678 = vunpack.c.l.b16 %v2611
    %v2679 = vunpack.c.l.b16 %v2612
    %v2680 = vunpack.c.l.b16 %v2613
    %v2681 = vunpack.c.l.b16 %v2614
    %v2682 = vunpack.c.l.b16 %v2615
    %v2683 = vunpack.c.l.b16 %v2616
    %v2684 = vunpack.c.l.b16 %v2617
    %v2685 = vunpack.c.l.b16 %v2618
    %v2686 = vunpack.c.l.b16 %v2619
    %v2687 = vunpack.c.l.b16 %v2620
    %v2688 = vunpack.c.l.b16 %v2621
    %v2689 = vunpack.c.l.b16 %v2622
    %v2690 = vunpack.c.l.b16 %v2623
    %v2691 = vunpack.c.l.b16 %v2624
    %v2692 = vpack.c.b16 %v2661, %v2660
    %v2693 = vpack.c.b16 %v2663, %v2662
    %v2694 = vpack.c.b16 %v2665, %v2664
    %v2695 = vpack.c.b16 %v2667, %v2666
    %v2696 = vpack.c.b16 %v2669, %v2668
    %v2697 = vpack.c.b16 %v2671, %v2670
    %v2698 = vpack.c.b16 %v2673, %v2672
    %v2699 = vpack.c.b16 %v2675, %v2674
    %v2700 = vpack.c.b16 %v2677, %v2676
    %v2701 = vpack.c.b16 %v2679, %v2678
    %v2702 = vpack.c.b16 %v2681, %v2680
    %v2703 = vpack.c.b16 %v2683, %v2682
    %v2704 = vpack.c.b16 %v2685, %v2684
    %v2705 = vpack.c.b16 %v2687, %v2686
    %v2706 = vpack.c.b16 %v2689, %v2688
    %v2707 = vpack.c.b16 %v2691, %v2690
    %2724 = vmatpush.bf16.msra.mxu0 %v2699
    %2725 = vmatpush.bf16.msra.mxu0 %v2698
    %2726 = vmatpush.bf16.msra.mxu0 %v2697
    %2727 = vmatpush.bf16.msra.mxu0 %v2696
    %2728 = vmatpush.bf16.msra.mxu0 %v2695
    %2729 = vmatpush.bf16.msra.mxu0 %v2694
    %2730 = vmatpush.bf16.msra.mxu0 %v2693
    %2731 = vmatpush.bf16.msra.mxu0 %v2692
    %2732 = vmatmul.bf16.gmra.mxu0 %v2590
    %v2733 = vpop.f32.mrf.mxu0
    %v2734 = vadd.f32 %v2627, %v2733
    %v2735 = vpop.f32.mrf.mxu0
    %v2736 = vadd.f32 %v2627, %v2735
    %2737 = vdwg.mxu0
    %2738 = vmatpush.bf16.msra.mxu0 %v2707
    %2739 = vmatpush.bf16.msra.mxu0 %v2706
    %2740 = vmatpush.bf16.msra.mxu0 %v2705
    %2741 = vmatpush.bf16.msra.mxu0 %v2704
    %2742 = vmatpush.bf16.msra.mxu0 %v2703
    %2743 = vmatpush.bf16.msra.mxu0 %v2702
    %2744 = vmatpush.bf16.msra.mxu0 %v2701
    %2745 = vmatpush.bf16.msra.mxu0 %v2700
    %2746 = vmatmul.bf16.gmra.mxu0 %v2591
    %v2747 = vpop.f32.mrf.mxu0
    %v2748 = vadd.f32 %v2734, %v2747
    %v2749 = vpop.f32.mrf.mxu0
    %v2750 = vadd.f32 %v2736, %v2749
    %2751 = vdwg.mxu0
    %v2752 = vpack.c.bf16 %v2750, %v2748
    %s2753 = scalar_lea.vmem [#allocation5], 1152
    %v2754 = vld [vmem:[%s2753] sm:$0xff]
    %v2755 = vld [vmem:[%s2753 + $0x8] sm:$0xff]
    %v2756 = vld [vmem:[%s2753 + $0x10] sm:$0xff]
    %v2757 = vld [vmem:[%s2753 + $0x18] sm:$0xff]
    %v2758 = vld [vmem:[%s2753 + $0x20] sm:$0xff]
    %v2759 = vld [vmem:[%s2753 + $0x28] sm:$0xff]
    %v2760 = vld [vmem:[%s2753 + $0x30] sm:$0xff]
    %v2761 = vld [vmem:[%s2753 + $0x38] sm:$0xff]
    %v2762 = vld [vmem:[%s2753 + $0x40] sm:$0xff]
    %v2763 = vld [vmem:[%s2753 + $0x48] sm:$0xff]
    %v2764 = vld [vmem:[%s2753 + $0x50] sm:$0xff]
    %v2765 = vld [vmem:[%s2753 + $0x58] sm:$0xff]
    %v2766 = vld [vmem:[%s2753 + $0x60] sm:$0xff]
    %v2767 = vld [vmem:[%s2753 + $0x68] sm:$0xff]
    %v2768 = vld [vmem:[%s2753 + $0x70] sm:$0xff]
    %v2769 = vld [vmem:[%s2753 + $0x78] sm:$0xff]
    %v2770 = vperm.slane %v2474, 1
    %v2771 = vperm.slane %v2475, 1
    %v2788 = vunpack.c.l.b16 %v2754
    %v2789 = vunpack.c.h.b16 %v2754
    %v2790 = vunpack.c.l.b16 %v2755
    %v2791 = vunpack.c.h.b16 %v2755
    %v2792 = vunpack.c.l.b16 %v2756
    %v2793 = vunpack.c.h.b16 %v2756
    %v2794 = vunpack.c.l.b16 %v2757
    %v2795 = vunpack.c.h.b16 %v2757
    %v2796 = vunpack.c.l.b16 %v2758
    %v2797 = vunpack.c.h.b16 %v2758
    %v2798 = vunpack.c.l.b16 %v2759
    %v2799 = vunpack.c.h.b16 %v2759
    %v2800 = vunpack.c.l.b16 %v2760
    %v2801 = vunpack.c.h.b16 %v2760
    %v2802 = vunpack.c.l.b16 %v2761
    %v2803 = vunpack.c.h.b16 %v2761
    %v2804 = vunpack.c.l.b16 %v2762
    %v2805 = vunpack.c.h.b16 %v2762
    %v2806 = vunpack.c.l.b16 %v2763
    %v2807 = vunpack.c.h.b16 %v2763
    %v2808 = vunpack.c.l.b16 %v2764
    %v2809 = vunpack.c.h.b16 %v2764
    %v2810 = vunpack.c.l.b16 %v2765
    %v2811 = vunpack.c.h.b16 %v2765
    %v2812 = vunpack.c.l.b16 %v2766
    %v2813 = vunpack.c.h.b16 %v2766
    %v2814 = vunpack.c.l.b16 %v2767
    %v2815 = vunpack.c.h.b16 %v2767
    %v2816 = vunpack.c.l.b16 %v2768
    %v2817 = vunpack.c.h.b16 %v2768
    %v2818 = vunpack.c.l.b16 %v2769
    %v2819 = vunpack.c.h.b16 %v2769
    %v2820 = vpack.c.b16 %v2790, %v2788
    %v2821 = vpack.c.b16 %v2791, %v2789
    %v2822 = vpack.c.b16 %v2794, %v2792
    %v2823 = vpack.c.b16 %v2795, %v2793
    %v2824 = vpack.c.b16 %v2798, %v2796
    %v2825 = vpack.c.b16 %v2799, %v2797
    %v2826 = vpack.c.b16 %v2802, %v2800
    %v2827 = vpack.c.b16 %v2803, %v2801
    %v2828 = vpack.c.b16 %v2806, %v2804
    %v2829 = vpack.c.b16 %v2807, %v2805
    %v2830 = vpack.c.b16 %v2810, %v2808
    %v2831 = vpack.c.b16 %v2811, %v2809
    %v2832 = vpack.c.b16 %v2814, %v2812
    %v2833 = vpack.c.b16 %v2815, %v2813
    %v2834 = vpack.c.b16 %v2818, %v2816
    %v2835 = vpack.c.b16 %v2819, %v2817
    %2852 = vmatpush.bf16.msra.mxu0 %v2834
    %2853 = vmatpush.bf16.msra.mxu0 %v2832
    %2854 = vmatpush.bf16.msra.mxu0 %v2830
    %2855 = vmatpush.bf16.msra.mxu0 %v2828
    %2856 = vmatpush.bf16.msra.mxu0 %v2826
    %2857 = vmatpush.bf16.msra.mxu0 %v2824
    %2858 = vmatpush.bf16.msra.mxu0 %v2822
    %2859 = vmatpush.bf16.msra.mxu0 %v2820
    %2860 = vmatmul.bf16.gmra.mxu0 %v2752
    %v2861 = vpop.f32.mrf.mxu0
    %v2862 = vadd.f32 %v2770, %v2861
    %v2863 = vpop.f32.mrf.mxu0
    %v2864 = vadd.f32 %v2770, %v2863
    %2865 = vdwg.mxu0
    %2866 = vmatpush.bf16.msra.mxu0 %v2835
    %2867 = vmatpush.bf16.msra.mxu0 %v2833
    %2868 = vmatpush.bf16.msra.mxu0 %v2831
    %2869 = vmatpush.bf16.msra.mxu0 %v2829
    %2870 = vmatpush.bf16.msra.mxu0 %v2827
    %2871 = vmatpush.bf16.msra.mxu0 %v2825
    %2872 = vmatpush.bf16.msra.mxu0 %v2823
    %2873 = vmatpush.bf16.msra.mxu0 %v2821
    %2874 = vmatmul.bf16.gmra.mxu0 %v2752
    %v2875 = vpop.f32.mrf.mxu0
    %v2876 = vadd.f32 %v2771, %v2875
    %v2877 = vpop.f32.mrf.mxu0
    %v2878 = vadd.f32 %v2771, %v2877
    %2879 = vdwg.mxu0
    %v2880 = vmax.f32 %v2862, 0.0
    %v2881 = vmax.f32 %v2876, 0.0
    %v2882 = vmax.f32 %v2864, 0.0
    %v2883 = vmax.f32 %v2878, 0.0
    %v2884 = vpack.c.bf16 %v2882, %v2880
    %v2885 = vpack.c.bf16 %v2883, %v2881
    %s2886 = scalar_lea.vmem [#allocation8], 1152
    %v2887 = vld [vmem:[%s2886] sm:$0xf]
    %v2888 = vld [vmem:[%s2886 + $0x4] sm:$0xf]
    %v2889 = vld [vmem:[%s2886 + $0x8] sm:$0xf]
    %v2890 = vld [vmem:[%s2886 + $0xc] sm:$0xf]
    %v2891 = vld [vmem:[%s2886 + $0x10] sm:$0xf]
    %v2892 = vld [vmem:[%s2886 + $0x14] sm:$0xf]
    %v2893 = vld [vmem:[%s2886 + $0x18] sm:$0xf]
    %v2894 = vld [vmem:[%s2886 + $0x1c] sm:$0xf]
    %v2895 = vld [vmem:[%s2886 + $0x20] sm:$0xf]
    %v2896 = vld [vmem:[%s2886 + $0x24] sm:$0xf]
    %v2897 = vld [vmem:[%s2886 + $0x28] sm:$0xf]
    %v2898 = vld [vmem:[%s2886 + $0x2c] sm:$0xf]
    %v2899 = vld [vmem:[%s2886 + $0x30] sm:$0xf]
    %v2900 = vld [vmem:[%s2886 + $0x34] sm:$0xf]
    %v2901 = vld [vmem:[%s2886 + $0x38] sm:$0xf]
    %v2902 = vld [vmem:[%s2886 + $0x3c] sm:$0xf]
    %v2903 = vld [vmem:[%s2886 + $0x40] sm:$0xf]
    %v2904 = vld [vmem:[%s2886 + $0x44] sm:$0xf]
    %v2905 = vld [vmem:[%s2886 + $0x48] sm:$0xf]
    %v2906 = vld [vmem:[%s2886 + $0x4c] sm:$0xf]
    %v2907 = vld [vmem:[%s2886 + $0x50] sm:$0xf]
    %v2908 = vld [vmem:[%s2886 + $0x54] sm:$0xf]
    %v2909 = vld [vmem:[%s2886 + $0x58] sm:$0xf]
    %v2910 = vld [vmem:[%s2886 + $0x5c] sm:$0xf]
    %v2911 = vld [vmem:[%s2886 + $0x60] sm:$0xf]
    %v2912 = vld [vmem:[%s2886 + $0x64] sm:$0xf]
    %v2913 = vld [vmem:[%s2886 + $0x68] sm:$0xf]
    %v2914 = vld [vmem:[%s2886 + $0x6c] sm:$0xf]
    %v2915 = vld [vmem:[%s2886 + $0x70] sm:$0xf]
    %v2916 = vld [vmem:[%s2886 + $0x74] sm:$0xf]
    %v2917 = vld [vmem:[%s2886 + $0x78] sm:$0xf]
    %v2918 = vld [vmem:[%s2886 + $0x7c] sm:$0xf]
    %v2919 = vperm.slane %v2626, 1
    %v2952 = vunpack.c.l.b16 %v2887
    %v2953 = vunpack.c.l.b16 %v2888
    %v2954 = vunpack.c.l.b16 %v2889
    %v2955 = vunpack.c.l.b16 %v2890
    %v2956 = vunpack.c.l.b16 %v2891
    %v2957 = vunpack.c.l.b16 %v2892
    %v2958 = vunpack.c.l.b16 %v2893
    %v2959 = vunpack.c.l.b16 %v2894
    %v2960 = vunpack.c.l.b16 %v2895
    %v2961 = vunpack.c.l.b16 %v2896
    %v2962 = vunpack.c.l.b16 %v2897
    %v2963 = vunpack.c.l.b16 %v2898
    %v2964 = vunpack.c.l.b16 %v2899
    %v2965 = vunpack.c.l.b16 %v2900
    %v2966 = vunpack.c.l.b16 %v2901
    %v2967 = vunpack.c.l.b16 %v2902
    %v2968 = vunpack.c.l.b16 %v2903
    %v2969 = vunpack.c.l.b16 %v2904
    %v2970 = vunpack.c.l.b16 %v2905
    %v2971 = vunpack.c.l.b16 %v2906
    %v2972 = vunpack.c.l.b16 %v2907
    %v2973 = vunpack.c.l.b16 %v2908
    %v2974 = vunpack.c.l.b16 %v2909
    %v2975 = vunpack.c.l.b16 %v2910
    %v2976 = vunpack.c.l.b16 %v2911
    %v2977 = vunpack.c.l.b16 %v2912
    %v2978 = vunpack.c.l.b16 %v2913
    %v2979 = vunpack.c.l.b16 %v2914
    %v2980 = vunpack.c.l.b16 %v2915
    %v2981 = vunpack.c.l.b16 %v2916
    %v2982 = vunpack.c.l.b16 %v2917
    %v2983 = vunpack.c.l.b16 %v2918
    %v2984 = vpack.c.b16 %v2953, %v2952
    %v2985 = vpack.c.b16 %v2955, %v2954
    %v2986 = vpack.c.b16 %v2957, %v2956
    %v2987 = vpack.c.b16 %v2959, %v2958
    %v2988 = vpack.c.b16 %v2961, %v2960
    %v2989 = vpack.c.b16 %v2963, %v2962
    %v2990 = vpack.c.b16 %v2965, %v2964
    %v2991 = vpack.c.b16 %v2967, %v2966
    %v2992 = vpack.c.b16 %v2969, %v2968
    %v2993 = vpack.c.b16 %v2971, %v2970
    %v2994 = vpack.c.b16 %v2973, %v2972
    %v2995 = vpack.c.b16 %v2975, %v2974
    %v2996 = vpack.c.b16 %v2977, %v2976
    %v2997 = vpack.c.b16 %v2979, %v2978
    %v2998 = vpack.c.b16 %v2981, %v2980
    %v2999 = vpack.c.b16 %v2983, %v2982
    %3016 = vmatpush.bf16.msra.mxu0 %v2991
    %3017 = vmatpush.bf16.msra.mxu0 %v2990
    %3018 = vmatpush.bf16.msra.mxu0 %v2989
    %3019 = vmatpush.bf16.msra.mxu0 %v2988
    %3020 = vmatpush.bf16.msra.mxu0 %v2987
    %3021 = vmatpush.bf16.msra.mxu0 %v2986
    %3022 = vmatpush.bf16.msra.mxu0 %v2985
    %3023 = vmatpush.bf16.msra.mxu0 %v2984
    %3024 = vmatmul.bf16.gmra.mxu0 %v2884
    %v3025 = vpop.f32.mrf.mxu0
    %v3026 = vadd.f32 %v2919, %v3025
    %v3027 = vpop.f32.mrf.mxu0
    %v3028 = vadd.f32 %v2919, %v3027
    %3029 = vdwg.mxu0
    %3030 = vmatpush.bf16.msra.mxu0 %v2999
    %3031 = vmatpush.bf16.msra.mxu0 %v2998
    %3032 = vmatpush.bf16.msra.mxu0 %v2997
    %3033 = vmatpush.bf16.msra.mxu0 %v2996
    %3034 = vmatpush.bf16.msra.mxu0 %v2995
    %3035 = vmatpush.bf16.msra.mxu0 %v2994
    %3036 = vmatpush.bf16.msra.mxu0 %v2993
    %3037 = vmatpush.bf16.msra.mxu0 %v2992
    %3038 = vmatmul.bf16.gmra.mxu0 %v2885
    %v3039 = vpop.f32.mrf.mxu0
    %v3040 = vadd.f32 %v3026, %v3039
    %v3041 = vpop.f32.mrf.mxu0
    %v3042 = vadd.f32 %v3028, %v3041
    %3043 = vdwg.mxu0
    %3044 = vst [vmem:[#allocation11] sm:$0xff] %v3040
    %3045 = vst [vmem:[#allocation11 + $0x8] sm:$0xff] %v3042
    // Predicated region
    $region42: #{tpu_custom_call.1} parent=1 // pred_check
      _
    $region43: #{tpu_custom_call.1} parent=1 // pred_check_branch
      %3047 = sbr.rel (0) target = $region45
    $region44: #{tpu_custom_call.1} parent=1 // pred_region
      %3049 = vsyncadd [#allocation4], 0
      %s3050 = sshll.u32 [#allocation11], 4
      %s3051 = int_to_ptr.vmem [resolvable:$true] %s3050
      %s3052 = sshll.u32 %s5, 4
      %s3053 = int_to_ptr.hbm [resolvable:$true] %s3052
      %3058 = dma.vmem_to_hbm [thread:$0]  %s3051, 256, %s3053, [#allocation4], 128, 128, 8
    $region45: #{tpu_custom_call.1} parent=1 // pred_fallthru
      _
    // Predicated region
    $region46: #{tpu_custom_call.1} parent=1 // pred_check
      _
    $region47: #{tpu_custom_call.1} parent=1 // pred_check_branch
      %3060 = sbr.rel (0) target = $region49
    $region48: #{tpu_custom_call.1} parent=1 // pred_region
      %3062 = dma.done [#allocation4], 256
    $region49: #{tpu_custom_call.1} parent=1 // pred_fallthru
      _
    %3063 = vsyncpa [#allocation3], 1
    %3064 = vsyncpa [#allocation6], 1
    %3065 = vsyncpa [#allocation9], 1
    %3066 = vsyncpa [#allocation4], 1

</llo_original>
